<compile_context>
chip_gen: v6e
topology: v6e:2x2x1
jax: 0.10.0
libtpu: 0.0.40
codegen_flags: <defaults>
</compile_context>

<pallas_src>
import math
from functools import partial

import jax
import jax.numpy as jnp
from jax.experimental import pallas as pl
from jax.experimental.pallas import tpu as pltpu

RESIZE = 320   # T.Resize(320) / T.CenterCrop(320)
PATCH = 16
EMBED = 64


# --------------------------------------------------------------------------
# glue: bilinear interpolation matrix (align_corners=False).  For upscaling
# (16 -> 320) torchvision's antialias flag is a no-op, so this matches
# T.Resize(320) for the test shapes.
# --------------------------------------------------------------------------
def _bilinear_matrix(out_size: int, in_size: int) -> jnp.ndarray:
    scale = in_size / out_size
    i = jnp.arange(out_size, dtype=jnp.float32)
    src = (i + 0.5) * scale - 0.5
    i0f = jnp.floor(src)
    frac = src - i0f
    i0 = jnp.clip(i0f, 0, in_size - 1).astype(jnp.int32)
    i1 = jnp.clip(i0f + 1, 0, in_size - 1).astype(jnp.int32)
    rows = jnp.arange(out_size)
    m = jnp.zeros((out_size, in_size), jnp.float32)
    m = m.at[rows, i0].add(1.0 - frac)
    m = m.at[rows, i1].add(frac)
    return m


# --------------------------------------------------------------------------
# Pallas kernel 1: fused bilinear resize + center crop.
#   out_plane = Rh_crop @ (img @ RwT_crop)   (width pass first -> lane dim 320)
# --------------------------------------------------------------------------
def _resize_kernel(rwt_ref, rh_ref, img_ref, out_ref):
    pps, h, w = img_ref.shape
    # Width pass, batched over all planes of this grid step:
    # (pps*h, w) @ (w, 320)  -> lane-dense f32 intermediate.
    tmp = jnp.dot(img_ref[...].reshape(pps * h, w), rwt_ref[...],
                  preferred_element_type=jnp.float32)
    tmp = tmp.astype(jnp.bfloat16)
    rh = rh_ref[...]
    for i in range(pps):                      # small static loop (planes/step)
        plane = jnp.dot(rh, tmp[i * h:(i + 1) * h, :],
                        preferred_element_type=jnp.float32)   # (320, 320)
        out_ref[i] = plane.astype(out_ref.dtype)


def resize_center_crop(x, size=RESIZE):
    """T.Resize(size) + T.CenterCrop(size) (eval path) as one Pallas call."""
    b, c, h, w = x.shape
    # T.Resize(size): smaller edge -> size, keep aspect ratio.
    if h <= w:
        oh, ow = size, int(round(w * size / h))
    else:
        oh, ow = int(round(h * size / w)), size
    top = (oh - size) // 2
    left = (ow - size) // 2
    # Fold the center crop into the interpolation matrices: the kernel writes
    # the (size, size) crop directly, no wasted MXU work / XLA slice.
    rh = _bilinear_matrix(oh, h)[top:top + size].astype(jnp.bfloat16)       # (size, h)
    rwt = _bilinear_matrix(ow, w)[left:left + size].T.astype(jnp.bfloat16)  # (w, size)

    planes = b * c
    g = 2 if planes % 2 == 0 else 1      # 2 parallel grid steps -> both v7x TCs
    pps = planes // g
    xf = x.reshape(planes, h, w).astype(jnp.bfloat16)

    out = pl.pallas_call(
        _resize_kernel,
        out_shape=jax.ShapeDtypeStruct((planes, size, size), jnp.bfloat16),
        grid=(g,),
        in_specs=[
            pl.BlockSpec((w, size), lambda i: (0, 0)),
            pl.BlockSpec((size, h), lambda i: (0, 0)),
            pl.BlockSpec((pps, h, w), lambda i: (i, 0, 0)),
        ],
        out_specs=pl.BlockSpec((pps, size, size), lambda i: (i, 0, 0)),
        compiler_params=pltpu.CompilerParams(
            dimension_semantics=("parallel",)),
    )(rwt, rh, xf)
    return out.reshape(b, c, size, size)


# --------------------------------------------------------------------------
# Pallas kernel 2: patch-embed + attention pooling + score + MSE loss.
#   patches: (B, P, D) bf16, we: (D, E) bf16, wcat = [wa | ws]: (E, 2) f32,
#   t: (B, 1, 1) f32.  Outputs: scores (B, 1, 1), loss (1, 1, 1).
#   Attention pooling is linear in feats, so pooled@ws == sum_p softmax_p * (feats_p@ws):
#   both projections are fused into one (E, 2) matmul.
# --------------------------------------------------------------------------
def _score_kernel(patches_ref, we_ref, wcat_ref, t_ref, scores_ref, loss_ref):
    b, p, d = patches_ref.shape
    x = patches_ref[...].reshape(b * p, d)                           # bf16
    feats = jnp.maximum(
        jnp.dot(x, we_ref[...], preferred_element_type=jnp.float32), 0.0)
    proj = jnp.dot(feats, wcat_ref[...],
                   preferred_element_type=jnp.float32)               # (B*P, 2)
    proj = proj.reshape(b, p, 2)
    logits = proj[:, :, 0:1]                                         # (B, P, 1)
    svals = proj[:, :, 1:2]                                          # (B, P, 1)
    # per-batch softmax over patches (f32 VPU/XLU path)
    m = jnp.max(logits, axis=1, keepdims=True)                       # (B, 1, 1)
    w = jnp.exp(logits - m)
    denom = jnp.sum(w, axis=1, keepdims=True)
    num = jnp.sum(w * svals, axis=1, keepdims=True)
    scores = num / denom                                             # (B, 1, 1)
    scores_ref[...] = scores                                         # single store
    dlt = scores - t_ref[...]
    loss_ref[...] = jnp.sum(dlt * dlt, axis=0, keepdims=True) / b    # single store


def score_and_loss(patches, we, wcat, t):
    b = patches.shape[0]
    vmem = pl.BlockSpec(memory_space=pltpu.MemorySpace.VMEM)
    scores, loss = pl.pallas_call(
        _score_kernel,
        out_shape=(jax.ShapeDtypeStruct((b, 1, 1), jnp.float32),
                   jax.ShapeDtypeStruct((1, 1, 1), jnp.float32)),
        in_specs=[vmem, vmem, vmem, vmem],
        out_specs=(vmem, vmem),
    )(patches, we, wcat, t.reshape(b, 1, 1).astype(jnp.float32))
    return scores[:, 0, 0], loss[0, 0, 0]


def _mse(a, b):
    return jnp.mean((a - b) ** 2)


# --------------------------------------------------------------------------
# TOPIQ forward (inference path: self.training == False)
# --------------------------------------------------------------------------
class TOPIQPallas:
    def __init__(self, key):
        k1, k2, k3 = jax.random.split(key, 3)
        d = PATCH * PATCH * 3
        we = jax.random.normal(k1, (d, EMBED), jnp.float32) / math.sqrt(d)
        wa = jax.random.normal(k2, (EMBED, 1), jnp.float32) / math.sqrt(EMBED)
        ws = jax.random.normal(k3, (EMBED, 1), jnp.float32) / math.sqrt(EMBED)
        self.we = we.astype(jnp.bfloat16)                 # MXU operand
        self.wcat = jnp.concatenate([wa, ws], axis=1)     # (EMBED, 2) f32
        self.training = False

    def forward(self, batch):
        x, t, index, gt = (batch['images'], batch['moss'],
                           batch['indexs'], batch['mossgt'])
        b, c, h, w = x.shape
        # T.Resize(320) + T.CenterCrop(320), fused (crop folded into matrices).
        # TODO(synk): training branch (resize without crop) not implemented;
        # this wrapper implements the eval path (self.training == False).
        xr = resize_center_crop(x, RESIZE)                # (B, C, 320, 320) bf16
        # patchify: pure layout glue (~2.4 MB) kept in XLA.
        gh = RESIZE // PATCH
        xp = xr.reshape(b, c, gh, PATCH, gh, PATCH).transpose(0, 2, 4, 3, 5, 1)
        patches = xp.reshape(b, gh * gh, PATCH * PATCH * c)

        scores, loss = score_and_loss(patches, self.we, self.wcat, t)

        lossfun = partial(_mse, scores)
        logdict = {'mse_score': [scores, gt], 'rmse_score': [scores, gt],
                   'mean_loss': [loss], 'srcc': [scores, gt],
                   'plcc': [scores, gt]}
        return {'scores': scores, 'loss': loss,
                'logdict': logdict, 'lossfun': lossfun}


if __name__ == "__main__":
    key = jax.random.PRNGKey(0)
    kx, kt, kg, kp = jax.random.split(key, 4)
    B = 2
    batch = {
        'images': jax.random.uniform(kx, (B, 3, 16, 16), jnp.float32),
        'moss': jax.random.uniform(kt, (B,), jnp.float32),
        'indexs': jnp.arange(B, dtype=jnp.int32),
        'mossgt': jax.random.uniform(kg, (B,), jnp.float32),
    }
    model = TOPIQPallas(kp)
    out = model.forward(batch)
    jax.block_until_ready((out['scores'], out['loss']))
    assert out['scores'].shape == (B,)
    assert out['loss'].shape == ()
    print("KERNEL_OK")
</pallas_src>

<mosaic_0001>
module attributes {stable_mosaic.version = 11 : i64} {
  func.func @_resize_kernel(%arg0: i32, %arg1: memref<16x320xbf16, #tpu.memory_space<vmem>>, %arg2: memref<320x16xbf16, #tpu.memory_space<vmem>>, %arg3: memref<3x16x16xbf16, #tpu.memory_space<vmem>>, %arg4: memref<3x320x320xbf16, #tpu.memory_space<vmem>>) attributes {dimension_semantics = [#tpu.dimension_semantics<parallel>], iteration_bounds = array<i64: 2>, scalar_prefetch = 0 : i64, scratch_operands = 0 : i64, tpu.core_type = #tpu.core_type<tc>, window_params = [{pipeline_mode = #tpu.pipeline_mode<synchronous>, transform_indices = @transform_0, window_bounds = array<i64: 16, 320>}, {pipeline_mode = #tpu.pipeline_mode<synchronous>, transform_indices = @transform_1, window_bounds = array<i64: 320, 16>}, {transform_indices = @transform_2, window_bounds = array<i64: 3, 16, 16>}, {transform_indices = @transform_3, window_bounds = array<i64: 3, 320, 320>}]} {
    %c0 = arith.constant 0 : index
    %c0_0 = arith.constant 0 : index
    %c0_1 = arith.constant 0 : index
    %0 = vector.load %arg3[%c0, %c0_0, %c0_1] : memref<3x16x16xbf16, #tpu.memory_space<vmem>>, vector<3x16x16xbf16>
    %1 = vector.shape_cast %0 : vector<3x16x16xbf16> to vector<48x16xbf16>
    %c0_2 = arith.constant 0 : index
    %c0_3 = arith.constant 0 : index
    %2 = vector.load %arg1[%c0_2, %c0_3] : memref<16x320xbf16, #tpu.memory_space<vmem>>, vector<16x320xbf16>
    %cst = arith.constant dense<0.000000e+00> : vector<48x320xf32>
    %3 = tpu.matmul %1, %2, %cst {dimension_numbers = #tpu.dot_dimension_numbers<[1], [0], [0], [1], [0, 0, 1, 1], [], []>} : vector<48x16xbf16>, vector<16x320xbf16>, vector<48x320xf32> -> vector<48x320xf32>
    %4 = arith.truncf %3 : vector<48x320xf32> to vector<48x320xbf16>
    %c0_4 = arith.constant 0 : index
    %c0_5 = arith.constant 0 : index
    %5 = vector.load %arg2[%c0_4, %c0_5] : memref<320x16xbf16, #tpu.memory_space<vmem>>, vector<320x16xbf16>
    %6 = vector.extract_strided_slice %4 {offsets = [0, 0], sizes = [16, 320], strides = [1, 1]} : vector<48x320xbf16> to vector<16x320xbf16>
    %cst_6 = arith.constant dense<0.000000e+00> : vector<320x320xf32>
    %7 = tpu.matmul %5, %6, %cst_6 {dimension_numbers = #tpu.dot_dimension_numbers<[1], [0], [0], [1], [0, 0, 1, 1], [], []>} : vector<320x16xbf16>, vector<16x320xbf16>, vector<320x320xf32> -> vector<320x320xf32>
    %8 = arith.truncf %7 : vector<320x320xf32> to vector<320x320xbf16>
    %c0_7 = arith.constant 0 : index
    %c0_8 = arith.constant 0 : index
    %c0_9 = arith.constant 0 : index
    %9 = vector.load %arg4[%c0_7, %c0_8, %c0_9] : memref<3x320x320xbf16, #tpu.memory_space<vmem>>, vector<1x320x320xbf16>
    %10 = vector.shape_cast %9 : vector<1x320x320xbf16> to vector<320x320xbf16>
    %11 = vector.shape_cast %8 : vector<320x320xbf16> to vector<1x320x320xbf16>
    tpu.vector_store %arg4[%c0_7, %c0_8, %c0_9], %11 {strides = array<i32>} : memref<3x320x320xbf16, #tpu.memory_space<vmem>>, vector<1x320x320xbf16>,
    %12 = vector.extract_strided_slice %4 {offsets = [16, 0], sizes = [16, 320], strides = [1, 1]} : vector<48x320xbf16> to vector<16x320xbf16>
    %cst_10 = arith.constant dense<0.000000e+00> : vector<320x320xf32>
    %13 = tpu.matmul %5, %12, %cst_10 {dimension_numbers = #tpu.dot_dimension_numbers<[1], [0], [0], [1], [0, 0, 1, 1], [], []>} : vector<320x16xbf16>, vector<16x320xbf16>, vector<320x320xf32> -> vector<320x320xf32>
    %14 = arith.truncf %13 : vector<320x320xf32> to vector<320x320xbf16>
    %c1 = arith.constant 1 : index
    %c0_11 = arith.constant 0 : index
    %c0_12 = arith.constant 0 : index
    %15 = vector.load %arg4[%c1, %c0_11, %c0_12] : memref<3x320x320xbf16, #tpu.memory_space<vmem>>, vector<1x320x320xbf16>
    %16 = vector.shape_cast %15 : vector<1x320x320xbf16> to vector<320x320xbf16>
    %17 = vector.shape_cast %14 : vector<320x320xbf16> to vector<1x320x320xbf16>
    tpu.vector_store %arg4[%c1, %c0_11, %c0_12], %17 {strides = array<i32>} : memref<3x320x320xbf16, #tpu.memory_space<vmem>>, vector<1x320x320xbf16>,
    %18 = vector.extract_strided_slice %4 {offsets = [32, 0], sizes = [16, 320], strides = [1, 1]} : vector<48x320xbf16> to vector<16x320xbf16>
    %cst_13 = arith.constant dense<0.000000e+00> : vector<320x320xf32>
    %19 = tpu.matmul %5, %18, %cst_13 {dimension_numbers = #tpu.dot_dimension_numbers<[1], [0], [0], [1], [0, 0, 1, 1], [], []>} : vector<320x16xbf16>, vector<16x320xbf16>, vector<320x320xf32> -> vector<320x320xf32>
    %20 = arith.truncf %19 : vector<320x320xf32> to vector<320x320xbf16>
    %c2 = arith.constant 2 : index
    %c0_14 = arith.constant 0 : index
    %c0_15 = arith.constant 0 : index
    %21 = vector.load %arg4[%c2, %c0_14, %c0_15] : memref<3x320x320xbf16, #tpu.memory_space<vmem>>, vector<1x320x320xbf16>
    %22 = vector.shape_cast %21 : vector<1x320x320xbf16> to vector<320x320xbf16>
    %23 = vector.shape_cast %20 : vector<320x320xbf16> to vector<1x320x320xbf16>
    tpu.vector_store %arg4[%c2, %c0_14, %c0_15], %23 {strides = array<i32>} : memref<3x320x320xbf16, #tpu.memory_space<vmem>>, vector<1x320x320xbf16>,
    return
  }
  func.func @transform_0(%arg0: i32) -> (i32, i32) {
    %c0_i32 = arith.constant 0 : i32
    %c0_i32_0 = arith.constant 0 : i32
    %c0_i32_1 = arith.constant 0 : i32
    return %c0_i32, %c0_i32_0 : i32, i32
  }
  func.func @transform_1(%arg0: i32) -> (i32, i32) {
    %c0_i32 = arith.constant 0 : i32
    %c0_i32_0 = arith.constant 0 : i32
    %c0_i32_1 = arith.constant 0 : i32
    return %c0_i32, %c0_i32_0 : i32, i32
  }
  func.func @transform_2(%arg0: i32) -> (i32, i32, i32) {
    %c0_i32 = arith.constant 0 : i32
    %c0_i32_0 = arith.constant 0 : i32
    %c0_i32_1 = arith.constant 0 : i32
    return %arg0, %c0_i32, %c0_i32_0 : i32, i32, i32
  }
  func.func @transform_3(%arg0: i32) -> (i32, i32, i32) {
    %c0_i32 = arith.constant 0 : i32
    %c0_i32_0 = arith.constant 0 : i32
    %c0_i32_1 = arith.constant 0 : i32
    return %arg0, %c0_i32, %c0_i32_0 : i32, i32, i32
  }
}

</mosaic_0001>

<llo_original>
// kernel: tpu_custom_call.1
$region0: #{tpu_custom_call.1}
  #allocation0 [shape = 'u32[]', space=smem, size = 0x4, offset = 0x4, fixed_abs, tag = 'smem constant byte address 0x4 - core index']
  #allocation1 [shape = 'u32[144,128]{1,0:T(1,128)}', space=vmem, size = 0x12000, scoped, tag = 'internal scratch']
  %s0 = inlined_call_operand.hbm [shape: bf16[16,320], index: 0, kind: input, shape index: {}]
  %s1 = inlined_call_operand.vmem [shape: bf16[320,16], index: 1, kind: input, shape index: {}]
  %s2 = inlined_call_operand.hbm [shape: bf16[6,16,16], index: 2, kind: input, shape index: {}]
  %s3 = inlined_call_operand.hbm [shape: bf16[6,320,320], index: 3, kind: output, shape index: {}]
  %s4 = sld [smem:[#allocation0]]
  $region53: #{tpu_custom_call.1} parent=0
    _
  %s6 = ssub.s32 1, %s4
  %s7 = scalar_select 0, %s6, %s4
  $region1: #{tpu_custom_call.1} parent=0
    #allocation2 [shape = 'u8[12288]{0}', space=vmem, size = 0x3000, scoped, tag = 'input window, operand 0, single buffered']
    #allocation3 [shape = 's32[2]{0}', space=sflag, size = 0x8, scoped, tag = 'scoped memory for tpu_custom_call.1']
    #allocation4 [shape = 's32[2]{0}', space=sflag, size = 0x8, scoped, tag = 'scoped memory for tpu_custom_call.1']
    #allocation5 [shape = 'u8[24576]{0}', space=vmem, size = 0x6000, scoped, tag = 'input window, operand 2']
    #allocation6 [shape = 's32[2]{0}', space=sflag, size = 0x8, scoped, tag = 'scoped memory for tpu_custom_call.1']
    #allocation7 [shape = 'u8[1474560]{0}', space=vmem, size = 0x168000, scoped, tag = 'output window, operand 0']
    %8 = vsyncpa [#allocation3], 0
    %9 = vsyncpa [#allocation6], 0
    %s10 = scalar_lea.sflag [#allocation6], 1
    %11 = vsyncpa %s10, 0
    %12 = vsyncpa [#allocation4], 0
    %s13 = scalar_lea.sflag [#allocation4], 1
    %14 = vsyncpa %s13, 0
    loop: start=0, step=1, limit=4
    $region2: #{tpu_custom_call.1} parent=1 // loop_pre_header
      _
    $region3: #{tpu_custom_call.1} parent=1 // loop_header
      %s16 = sphi 0, %s20
      %p17 = scmp.ge.s32.totalorder %s16, 4
      %s24 = sphi 0, %s24
      %s26 = sphi 0, %s24
      %s27 = sphi 0, %s26
      %s41 = sphi 0, %s27
      %s45 = sphi 0, %s45
      %s47 = sphi 0, %s45
      %s48 = sphi 0, %s47
      %s62 = sphi 0, %s48
      %s68 = sphi 0, %s70
      %s71 = sphi 0, %s68
      %s72 = sphi 0, %s71
      %s88 = sphi 0, %s72
      %s94 = sphi 0, %s96
      %s97 = sphi 0, %s94
      %s98 = sphi 0, %s97
      %s114 = sphi 0, %s98
    $region4: #{tpu_custom_call.1} parent=1 // loop_header_branch
      %19 = sbr.rel (%p17) target = $region8
    $region5: #{tpu_custom_call.1} parent=1 // loop_body
      %s21 = ssub.s32 %s16, 1
      %s22 = ssub.s32 %s16, 2
      %s23 = sadd.s32 %s16, 1
      %s25 = sadd.s32 %s24, 1
      %p28 = scmp.eq.s32.totalorder %s16, 1
      %p29 = scmp.ne.s32.totalorder %s24, %s26
      %p30 = scmp.eq.s32.totalorder %s16, 0
      %p31 = por %p29, %p30
      %p32 = scmp.ne.s32.totalorder %s24, %s26
      %p33 = scmp.eq.s32.totalorder %s21, 1
      %p34 = por %p32, %p33
      %p35 = scmp.ne.s32.totalorder %s26, %s27
      %p36 = scmp.eq.s32.totalorder %s21, 0
      %p37 = por %p35, %p36
      %p38 = scmp.ne.s32.totalorder %s26, %s27
      %p39 = scmp.eq.s32.totalorder %s22, 1
      %p40 = por %p38, %p39
      %p42 = scmp.ne.s32.totalorder %s27, %s41
      %p43 = scmp.eq.s32.totalorder %s22, 0
      %p44 = por %p42, %p43
      %s46 = sadd.s32 %s45, 1
      %p49 = scmp.eq.s32.totalorder %s16, 1
      %p50 = scmp.ne.s32.totalorder %s45, %s47
      %p51 = scmp.eq.s32.totalorder %s16, 0
      %p52 = por %p50, %p51
      %p53 = scmp.ne.s32.totalorder %s45, %s47
      %p54 = scmp.eq.s32.totalorder %s21, 1
      %p55 = por %p53, %p54
      %p56 = scmp.ne.s32.totalorder %s47, %s48
      %p57 = scmp.eq.s32.totalorder %s21, 0
      %p58 = por %p56, %p57
      %p59 = scmp.ne.s32.totalorder %s47, %s48
      %p60 = scmp.eq.s32.totalorder %s22, 1
      %p61 = por %p59, %p60
      %p63 = scmp.ne.s32.totalorder %s48, %s62
      %p64 = scmp.eq.s32.totalorder %s22, 0
      %p65 = por %p63, %p64
      %s66 = ssub.s32 %s16, %s23
      %p67 = scmp.eq.s32.totalorder %s66, 0
      %s69 = sadd.s32 %s68, 1
      %s70 = scalar_select %p67, %s68, %s69
      %p73 = pneg %p67
      %p74 = scmp.eq.s32.totalorder %s16, 1
      %p75 = por %p73, %p74
      %p76 = scmp.ne.s32.totalorder %s68, %s71
      %p77 = scmp.eq.s32.totalorder %s16, 0
      %p78 = por %p76, %p77
      %p79 = scmp.ne.s32.totalorder %s68, %s71
      %p80 = scmp.eq.s32.totalorder %s21, 1
      %p81 = por %p79, %p80
      %p82 = scmp.ne.s32.totalorder %s71, %s72
      %p83 = scmp.eq.s32.totalorder %s21, 0
      %p84 = por %p82, %p83
      %p85 = scmp.ne.s32.totalorder %s71, %s72
      %p86 = scmp.eq.s32.totalorder %s22, 1
      %p87 = por %p85, %p86
      %p89 = scmp.ne.s32.totalorder %s72, %s88
      %p90 = scmp.eq.s32.totalorder %s22, 0
      %p91 = por %p89, %p90
      %s92 = ssub.s32 %s16, %s23
      %p93 = scmp.eq.s32.totalorder %s92, 0
      %s95 = sadd.s32 %s94, 1
      %s96 = scalar_select %p93, %s94, %s95
      %p99 = pneg %p93
      %p100 = scmp.eq.s32.totalorder %s16, 1
      %p101 = por %p99, %p100
      %p102 = scmp.ne.s32.totalorder %s94, %s97
      %p103 = scmp.eq.s32.totalorder %s16, 0
      %p104 = por %p102, %p103
      %p105 = scmp.ne.s32.totalorder %s94, %s97
      %p106 = scmp.eq.s32.totalorder %s21, 1
      %p107 = por %p105, %p106
      %p108 = scmp.ne.s32.totalorder %s97, %s98
      %p109 = scmp.eq.s32.totalorder %s21, 0
      %p110 = por %p108, %p109
      %p111 = scmp.ne.s32.totalorder %s97, %s98
      %p112 = scmp.eq.s32.totalorder %s22, 1
      %p113 = por %p111, %p112
      %p115 = scmp.ne.s32.totalorder %s98, %s114
      %p116 = scmp.eq.s32.totalorder %s22, 0
      %p117 = por %p115, %p116
      %p118 = scmp.le.s32.totalorder 1, %s16
      %p119 = scmp.lt.s32.totalorder %s16, 3
      %p120 = pnand %p118, %p119
      %p121 = pneg %p120
      // Predicated region
      $region9: #{tpu_custom_call.1} parent=5 // pred_check
        _
      $region10: #{tpu_custom_call.1} parent=5 // pred_check_branch
        %123 = sbr.rel (%p120) target = $region12
      $region11: #{tpu_custom_call.1} parent=5 // pred_region
        %s124 = ssub.s32 %s16, 1
        // Predicated region
        $region13: #{tpu_custom_call.1} parent=11 // pred_check
          %p125 = pneg %p37
        $region14: #{tpu_custom_call.1} parent=11 // pred_check_branch
          %127 = sbr.rel (%p125) target = $region16
        $region15: #{tpu_custom_call.1} parent=11 // pred_region
          %s129 = ssub.s32 384, 384
          %130 = vsyncadd [#allocation3], %s129
          %s131 = sshll.u32 [#allocation2], 4
          %s132 = int_to_ptr.vmem [resolvable:$true] %s131
          %137 = dma.hbm_to_vmem [thread:$0]  %s0, 384, %s132, [#allocation3], 192, 192, 12
        $region16: #{tpu_custom_call.1} parent=11 // pred_fallthru
          _
        // Predicated region
        $region17: #{tpu_custom_call.1} parent=11 // pred_check
          %p138 = pneg %p58
        $region18: #{tpu_custom_call.1} parent=11 // pred_check_branch
          %140 = sbr.rel (%p138) target = $region20
        $region19: #{tpu_custom_call.1} parent=11 // pred_region
          _
        $region20: #{tpu_custom_call.1} parent=11 // pred_fallthru
          _
      $region12: #{tpu_custom_call.1} parent=5 // pred_fallthru
        _
      %p141 = scmp.lt.s32.totalorder %s16, 2
      // Predicated region
      $region21: #{tpu_custom_call.1} parent=5 // pred_check
        %p142 = pneg %p141
      $region22: #{tpu_custom_call.1} parent=5 // pred_check_branch
        %144 = sbr.rel (%p142) target = $region24
      $region23: #{tpu_custom_call.1} parent=5 // pred_region
        // Predicated region
        $region25: #{tpu_custom_call.1} parent=23 // pred_check
          %p145 = pneg %p78
        $region26: #{tpu_custom_call.1} parent=23 // pred_check_branch
          %147 = sbr.rel (%p145) target = $region28
        $region27: #{tpu_custom_call.1} parent=23 // pred_region
          %s148 = sand.u32 %s68, 1
          %s149 = scalar_lea.sflag [#allocation6], %s148
          %s150 = sand.u32 %s68, 1
          %s151 = smul.addr %s150, 24
          %s152 = scalar_lea.vmem [#allocation5], %s151
          %s153 = smul.u32 3, %s16
          %s155 = ssub.s32 384, 384
          %156 = vsyncadd %s149, %s155
          %s157 = smul.addr %s153, 2
          %s158 = smul.addr %s157, 64
          %s159 = scalar_lea.hbm %s2, %s158
          %s160 = sshll.u32 %s152, 4
          %s161 = int_to_ptr.vmem [resolvable:$true] %s160
          %166 = dma.hbm_to_vmem [thread:$0]  %s159, 384, %s161, %s149, 64, 64, 4
        $region28: #{tpu_custom_call.1} parent=23 // pred_fallthru
          _
      $region24: #{tpu_custom_call.1} parent=5 // pred_fallthru
        _
      %p167 = scmp.le.s32.totalorder 1, %s16
      %p168 = scmp.lt.s32.totalorder %s16, 3
      %p169 = pnand %p167, %p168
      %p170 = pneg %p169
      // Predicated region
      $region29: #{tpu_custom_call.1} parent=5 // pred_check
        _
      $region30: #{tpu_custom_call.1} parent=5 // pred_check_branch
        %172 = sbr.rel (%p169) target = $region32
      $region31: #{tpu_custom_call.1} parent=5 // pred_region
        %s173 = ssub.s32 %s16, 1
        // Predicated region
        $region33: #{tpu_custom_call.1} parent=31 // pred_check
          %p174 = pneg %p37
        $region34: #{tpu_custom_call.1} parent=31 // pred_check_branch
          %176 = sbr.rel (%p174) target = $region36
        $region35: #{tpu_custom_call.1} parent=31 // pred_region
          %177 = dma.done [#allocation3], 384
        $region36: #{tpu_custom_call.1} parent=31 // pred_fallthru
          _
        %s178 = sand.u32 %s71, 1
        %s179 = scalar_lea.sflag [#allocation6], %s178
        %s180 = sand.u32 %s71, 1
        %s181 = smul.addr %s180, 24
        %s182 = scalar_lea.vmem [#allocation5], %s181
        // Predicated region
        $region37: #{tpu_custom_call.1} parent=31 // pred_check
          %p183 = pneg %p84
        $region38: #{tpu_custom_call.1} parent=31 // pred_check_branch
          %185 = sbr.rel (%p183) target = $region40
        $region39: #{tpu_custom_call.1} parent=31 // pred_region
          %186 = dma.done %s179, 384
        $region40: #{tpu_custom_call.1} parent=31 // pred_fallthru
          _
        %p187 = pneg %p37
        %p188 = pneg %p34
        %p189 = pneg %p58
        %p190 = pneg %p55
        %s191 = sand.u32 %s71, 1
        %s192 = scalar_lea.sflag [#allocation6], %s191
        %s193 = sand.u32 %s71, 1
        %s194 = smul.addr %s193, 24
        %s195 = scalar_lea.vmem [#allocation5], %s194
        %p196 = pneg %p84
        %p197 = pneg %p81
        %p198 = pneg %p110
        %p199 = pneg %p107
        %s200 = sand.u32 %s97, 1
        %s201 = scalar_lea.sflag [#allocation4], %s200
        %s202 = sand.u32 %s97, 1
        %s203 = smul.addr %s202, 1440
        %s204 = scalar_lea.vmem [#allocation7], %s203
        %s205 = smul.u32 3, %s21
        %s206 = smul.u32 3, %s21
        %v208 = vld [vmem:[%s182] sm:$0xf]
        %v209 = vld [vmem:[%s182 + $0x4] sm:$0xf]
        %v210 = vld [vmem:[%s182 + $0x8] sm:$0xf]
        %v211 = vld [vmem:[%s182 + $0xc] sm:$0xf]
        %v212 = vld [vmem:[%s182 + $0x10] sm:$0xf]
        %v213 = vld [vmem:[%s182 + $0x14] sm:$0xf]
        %v214 = vld [vmem:[#allocation2] sm:$0xff]
        %v215 = vld [vmem:[#allocation2 + $0x8] sm:$0xf]
        %v216 = vld [vmem:[#allocation2 + $0xc] sm:$0xff]
        %v217 = vld [vmem:[#allocation2 + $0x14] sm:$0xf]
        %v224 = vunpack.c.l.b16 %v208
        %v225 = vunpack.c.l.b16 %v209
        %v226 = vunpack.c.l.b16 %v210
        %v227 = vunpack.c.l.b16 %v211
        %v228 = vunpack.c.l.b16 %v212
        %v229 = vunpack.c.l.b16 %v213
        %v230 = vpack.c.b16 %v225, %v224
        %v231 = vpack.c.b16 %v227, %v226
        %v232 = vpack.c.b16 %v229, %v228
        %v237 = vunpack.c.l.b16 %v214
        %v238 = vunpack.c.h.b16 %v214
        %v239 = vunpack.c.l.b16 %v215
        %v240 = vunpack.c.l.b16 %v216
        %v241 = vunpack.c.h.b16 %v216
        %v242 = vunpack.c.l.b16 %v217
        %v243 = vpack.c.b16 %v240, %v237
        %v244 = vpack.c.b16 %v241, %v238
        %v245 = vpack.c.b16 %v242, %v239
        %vm249 = vcmask 130048
        %v251 = vsel %vm249, %v230, 0
        %v254 = vsel %vm249, %v231, 0
        %v257 = vsel %vm249, %v232, 0
        %259 = vmatprep.subr.bf16.mxu0 0
        %260 = vmatpush1.bf16.msra.mxu0 0
        %261 = vmatprep.subr.bf16.mxu0 0
        %262 = vmatpush1.bf16.msra.mxu0 0
        %263 = vmatprep.subr.bf16.mxu0 0
        %264 = vmatpush1.bf16.msra.mxu0 0
        %265 = vmatprep.subr.bf16.mxu0 0
        %266 = vmatpush1.bf16.msra.mxu0 0
        %267 = vmatprep.subr.bf16.mxu0 0
        %268 = vmatpush1.bf16.msra.mxu0 0
        %269 = vmatprep.subr.bf16.mxu0 0
        %270 = vmatpush1.bf16.msra.mxu0 0
        %271 = vmatprep.subr.bf16.mxu0 0
        %272 = vmatpush1.bf16.msra.mxu0 0
        %273 = vmatprep.subr.bf16.mxu0 %v244
        %274 = vmatpush1.bf16.msra.mxu0 %v243
        %275 = vmatprep.subr.bf16.mxu0 0
        %276 = vmatpush2.bf16.msra.mxu0 0
        %277 = vmatprep.subr.bf16.mxu0 0
        %278 = vmatpush2.bf16.msra.mxu0 0
        %279 = vmatprep.subr.bf16.mxu0 0
        %280 = vmatpush2.bf16.msra.mxu0 0
        %281 = vmatprep.subr.bf16.mxu0 0
        %282 = vmatpush2.bf16.msra.mxu0 0
        %283 = vmatprep.subr.bf16.mxu0 0
        %284 = vmatpush2.bf16.msra.mxu0 0
        %285 = vmatprep.subr.bf16.mxu0 0
        %286 = vmatpush2.bf16.msra.mxu0 0
        %287 = vmatprep.subr.bf16.mxu0 0
        %288 = vmatpush2.bf16.msra.mxu0 0
        %289 = vmatprep.subr.bf16.mxu0 0
        %290 = vmatpush2.bf16.msra.mxu0 0
        %291 = vmatprep.mubr.bf16.mxu0 0
        %292 = vmatmul.mubr.bf16.gmra.mxu0 %v251
        %v293 = vpop.f32.mrf.mxu0
        %v294 = vadd.f32 0.0, %v293
        %v295 = vpop.f32.mrf.mxu0
        %v296 = vadd.f32 0.0, %v295
        %v297 = vpop.f32.mrf.mxu0
        %v298 = vadd.f32 0.0, %v297
        %v299 = vpop.f32.mrf.mxu0
        %v300 = vadd.f32 0.0, %v299
        %301 = vmatprep.mubr.bf16.mxu0 0
        %302 = vmatmul.mubr.bf16.gmra.mxu0 %v254
        %v303 = vpop.f32.mrf.mxu0
        %v304 = vadd.f32 0.0, %v303
        %v305 = vpop.f32.mrf.mxu0
        %v306 = vadd.f32 0.0, %v305
        %v307 = vpop.f32.mrf.mxu0
        %v308 = vadd.f32 0.0, %v307
        %v309 = vpop.f32.mrf.mxu0
        %v310 = vadd.f32 0.0, %v309
        %311 = vmatprep.mubr.bf16.mxu0 0
        %312 = vmatmul.mubr.bf16.gmra.mxu0 %v257
        %v313 = vpop.f32.mrf.mxu0
        %v314 = vadd.f32 0.0, %v313
        %v315 = vpop.f32.mrf.mxu0
        %v316 = vadd.f32 0.0, %v315
        %v317 = vpop.f32.mrf.mxu0
        %v318 = vadd.f32 0.0, %v317
        %v319 = vpop.f32.mrf.mxu0
        %v320 = vadd.f32 0.0, %v319
        %321 = vdwg.mxu0
        %322 = vmatprep.subr.bf16.mxu0 0
        %323 = vmatpush1.bf16.msra.mxu0 0
        %324 = vmatprep.subr.bf16.mxu0 0
        %325 = vmatpush1.bf16.msra.mxu0 0
        %326 = vmatprep.subr.bf16.mxu0 0
        %327 = vmatpush1.bf16.msra.mxu0 0
        %328 = vmatprep.subr.bf16.mxu0 0
        %329 = vmatpush1.bf16.msra.mxu0 0
        %330 = vmatprep.subr.bf16.mxu0 0
        %331 = vmatpush1.bf16.msra.mxu0 0
        %332 = vmatprep.subr.bf16.mxu0 0
        %333 = vmatpush1.bf16.msra.mxu0 0
        %334 = vmatprep.subr.bf16.mxu0 0
        %335 = vmatpush1.bf16.msra.mxu0 0
        %336 = vmatprep.subr.bf16.mxu0 0
        %337 = vmatpush1.bf16.msra.mxu0 %v245
        %338 = vmatprep.subr.bf16.mxu0 0
        %339 = vmatpush2.bf16.msra.mxu0 0
        %340 = vmatprep.subr.bf16.mxu0 0
        %341 = vmatpush2.bf16.msra.mxu0 0
        %342 = vmatprep.subr.bf16.mxu0 0
        %343 = vmatpush2.bf16.msra.mxu0 0
        %344 = vmatprep.subr.bf16.mxu0 0
        %345 = vmatpush2.bf16.msra.mxu0 0
        %346 = vmatprep.subr.bf16.mxu0 0
        %347 = vmatpush2.bf16.msra.mxu0 0
        %348 = vmatprep.subr.bf16.mxu0 0
        %349 = vmatpush2.bf16.msra.mxu0 0
        %350 = vmatprep.subr.bf16.mxu0 0
        %351 = vmatpush2.bf16.msra.mxu0 0
        %352 = vmatprep.subr.bf16.mxu0 0
        %353 = vmatpush2.bf16.msra.mxu0 0
        %354 = vmatprep.mubr.bf16.mxu0 0
        %355 = vmatmul.mubr.bf16.gmra.mxu0 %v251
        %v356 = vpop.f32.mrf.mxu0
        %v357 = vadd.f32 0.0, %v356
        %v358 = vpop.f32.mrf.mxu0
        %v359 = vpop.f32.mrf.mxu0
        %v360 = vadd.f32 0.0, %v359
        %v361 = vpop.f32.mrf.mxu0
        %362 = vmatprep.mubr.bf16.mxu0 0
        %363 = vmatmul.mubr.bf16.gmra.mxu0 %v254
        %v364 = vpop.f32.mrf.mxu0
        %v365 = vadd.f32 0.0, %v364
        %v366 = vpop.f32.mrf.mxu0
        %v367 = vpop.f32.mrf.mxu0
        %v368 = vadd.f32 0.0, %v367
        %v369 = vpop.f32.mrf.mxu0
        %370 = vmatprep.mubr.bf16.mxu0 0
        %371 = vmatmul.mubr.bf16.gmra.mxu0 %v257
        %v372 = vpop.f32.mrf.mxu0
        %v373 = vadd.f32 0.0, %v372
        %v374 = vpop.f32.mrf.mxu0
        %v375 = vpop.f32.mrf.mxu0
        %v376 = vadd.f32 0.0, %v375
        %v377 = vpop.f32.mrf.mxu0
        %378 = vdwg.mxu0
        %v379 = vpack.c.bf16 %v298, %v294
        %v380 = vpack.c.bf16 %v300, %v296
        %v381 = vpack.c.bf16 %v360, %v357
        %v382 = vpack.c.bf16 %v308, %v304
        %v383 = vpack.c.bf16 %v310, %v306
        %v384 = vpack.c.bf16 %v368, %v365
        %v385 = vpack.c.bf16 %v318, %v314
        %v386 = vpack.c.bf16 %v320, %v316
        %v387 = vpack.c.bf16 %v376, %v373
        %v388 = vld [vmem:[%s1] sm:$0xf]
        %v389 = vld [vmem:[%s1 + $0x4] sm:$0xf]
        %v390 = vld [vmem:[%s1 + $0x8] sm:$0xf]
        %v391 = vld [vmem:[%s1 + $0xc] sm:$0xf]
        %v392 = vld [vmem:[%s1 + $0x10] sm:$0xf]
        %v393 = vld [vmem:[%s1 + $0x14] sm:$0xf]
        %v394 = vld [vmem:[%s1 + $0x18] sm:$0xf]
        %v395 = vld [vmem:[%s1 + $0x1c] sm:$0xf]
        %v396 = vld [vmem:[%s1 + $0x20] sm:$0xf]
        %v397 = vld [vmem:[%s1 + $0x24] sm:$0xf]
        %v398 = vld [vmem:[%s1 + $0x28] sm:$0xf]
        %v399 = vld [vmem:[%s1 + $0x2c] sm:$0xf]
        %v400 = vld [vmem:[%s1 + $0x30] sm:$0xf]
        %v401 = vld [vmem:[%s1 + $0x34] sm:$0xf]
        %v402 = vld [vmem:[%s1 + $0x38] sm:$0xf]
        %v403 = vld [vmem:[%s1 + $0x3c] sm:$0xf]
        %v404 = vld [vmem:[%s1 + $0x40] sm:$0xf]
        %v405 = vld [vmem:[%s1 + $0x44] sm:$0xf]
        %v406 = vld [vmem:[%s1 + $0x48] sm:$0xf]
        %v407 = vld [vmem:[%s1 + $0x4c] sm:$0xf]
        %v408 = vld [vmem:[%s1 + $0x50] sm:$0xf]
        %v409 = vld [vmem:[%s1 + $0x54] sm:$0xf]
        %v410 = vld [vmem:[%s1 + $0x58] sm:$0xf]
        %v411 = vld [vmem:[%s1 + $0x5c] sm:$0xf]
        %v412 = vld [vmem:[%s1 + $0x60] sm:$0xf]
        %v413 = vld [vmem:[%s1 + $0x64] sm:$0xf]
        %v414 = vld [vmem:[%s1 + $0x68] sm:$0xf]
        %v415 = vld [vmem:[%s1 + $0x6c] sm:$0xf]
        %v416 = vld [vmem:[%s1 + $0x70] sm:$0xf]
        %v417 = vld [vmem:[%s1 + $0x74] sm:$0xf]
        %v418 = vld [vmem:[%s1 + $0x78] sm:$0xf]
        %v419 = vld [vmem:[%s1 + $0x7c] sm:$0xf]
        %v420 = vld [vmem:[%s1 + $0x80] sm:$0xf]
        %v421 = vld [vmem:[%s1 + $0x84] sm:$0xf]
        %v422 = vld [vmem:[%s1 + $0x88] sm:$0xf]
        %v423 = vld [vmem:[%s1 + $0x8c] sm:$0xf]
        %v424 = vld [vmem:[%s1 + $0x90] sm:$0xf]
        %v425 = vld [vmem:[%s1 + $0x94] sm:$0xf]
        %v426 = vld [vmem:[%s1 + $0x98] sm:$0xf]
        %v427 = vld [vmem:[%s1 + $0x9c] sm:$0xf]
        %v468 = vunpack.c.l.b16 %v388
        %v469 = vunpack.c.l.b16 %v389
        %v470 = vunpack.c.l.b16 %v390
        %v471 = vunpack.c.l.b16 %v391
        %v472 = vunpack.c.l.b16 %v392
        %v473 = vunpack.c.l.b16 %v393
        %v474 = vunpack.c.l.b16 %v394
        %v475 = vunpack.c.l.b16 %v395
        %v476 = vunpack.c.l.b16 %v396
        %v477 = vunpack.c.l.b16 %v397
        %v478 = vunpack.c.l.b16 %v398
        %v479 = vunpack.c.l.b16 %v399
        %v480 = vunpack.c.l.b16 %v400
        %v481 = vunpack.c.l.b16 %v401
        %v482 = vunpack.c.l.b16 %v402
        %v483 = vunpack.c.l.b16 %v403
        %v484 = vunpack.c.l.b16 %v404
        %v485 = vunpack.c.l.b16 %v405
        %v486 = vunpack.c.l.b16 %v406
        %v487 = vunpack.c.l.b16 %v407
        %v488 = vunpack.c.l.b16 %v408
        %v489 = vunpack.c.l.b16 %v409
        %v490 = vunpack.c.l.b16 %v410
        %v491 = vunpack.c.l.b16 %v411
        %v492 = vunpack.c.l.b16 %v412
        %v493 = vunpack.c.l.b16 %v413
        %v494 = vunpack.c.l.b16 %v414
        %v495 = vunpack.c.l.b16 %v415
        %v496 = vunpack.c.l.b16 %v416
        %v497 = vunpack.c.l.b16 %v417
        %v498 = vunpack.c.l.b16 %v418
        %v499 = vunpack.c.l.b16 %v419
        %v500 = vunpack.c.l.b16 %v420
        %v501 = vunpack.c.l.b16 %v421
        %v502 = vunpack.c.l.b16 %v422
        %v503 = vunpack.c.l.b16 %v423
        %v504 = vunpack.c.l.b16 %v424
        %v505 = vunpack.c.l.b16 %v425
        %v506 = vunpack.c.l.b16 %v426
        %v507 = vunpack.c.l.b16 %v427
        %v508 = vpack.c.b16 %v469, %v468
        %v509 = vpack.c.b16 %v471, %v470
        %v510 = vpack.c.b16 %v473, %v472
        %v511 = vpack.c.b16 %v475, %v474
        %v512 = vpack.c.b16 %v477, %v476
        %v513 = vpack.c.b16 %v479, %v478
        %v514 = vpack.c.b16 %v481, %v480
        %v515 = vpack.c.b16 %v483, %v482
        %v516 = vpack.c.b16 %v485, %v484
        %v517 = vpack.c.b16 %v487, %v486
        %v518 = vpack.c.b16 %v489, %v488
        %v519 = vpack.c.b16 %v491, %v490
        %v520 = vpack.c.b16 %v493, %v492
        %v521 = vpack.c.b16 %v495, %v494
        %v522 = vpack.c.b16 %v497, %v496
        %v523 = vpack.c.b16 %v499, %v498
        %v524 = vpack.c.b16 %v501, %v500
        %v525 = vpack.c.b16 %v503, %v502
        %v526 = vpack.c.b16 %v505, %v504
        %v527 = vpack.c.b16 %v507, %v506
        %v529 = vsel %vm249, %v508, 0
        %v532 = vsel %vm249, %v509, 0
        %v535 = vsel %vm249, %v510, 0
        %v538 = vsel %vm249, %v511, 0
        %v541 = vsel %vm249, %v512, 0
        %v544 = vsel %vm249, %v513, 0
        %v547 = vsel %vm249, %v514, 0
        %v550 = vsel %vm249, %v515, 0
        %v553 = vsel %vm249, %v516, 0
        %v556 = vsel %vm249, %v517, 0
        %v559 = vsel %vm249, %v518, 0
        %v562 = vsel %vm249, %v519, 0
        %v565 = vsel %vm249, %v520, 0
        %v568 = vsel %vm249, %v521, 0
        %v571 = vsel %vm249, %v522, 0
        %v574 = vsel %vm249, %v523, 0
        %v577 = vsel %vm249, %v524, 0
        %v580 = vsel %vm249, %v525, 0
        %v583 = vsel %vm249, %v526, 0
        %v586 = vsel %vm249, %v527, 0
        %588 = vmatprep.subr.bf16.mxu0 0
        %589 = vmatpush1.bf16.msra.mxu0 0
        %590 = vmatprep.subr.bf16.mxu0 0
        %591 = vmatpush1.bf16.msra.mxu0 0
        %592 = vmatprep.subr.bf16.mxu0 0
        %593 = vmatpush1.bf16.msra.mxu0 0
        %594 = vmatprep.subr.bf16.mxu0 0
        %595 = vmatpush1.bf16.msra.mxu0 0
        %596 = vmatprep.subr.bf16.mxu0 0
        %597 = vmatpush1.bf16.msra.mxu0 0
        %598 = vmatprep.subr.bf16.mxu0 0
        %599 = vmatpush1.bf16.msra.mxu0 0
        %600 = vmatprep.subr.bf16.mxu0 0
        %601 = vmatpush1.bf16.msra.mxu0 0
        %602 = vmatprep.subr.bf16.mxu0 %v380
        %603 = vmatpush1.bf16.msra.mxu0 %v379
        %604 = vmatprep.subr.bf16.mxu0 0
        %605 = vmatpush2.bf16.msra.mxu0 0
        %606 = vmatprep.subr.bf16.mxu0 0
        %607 = vmatpush2.bf16.msra.mxu0 0
        %608 = vmatprep.subr.bf16.mxu0 0
        %609 = vmatpush2.bf16.msra.mxu0 0
        %610 = vmatprep.subr.bf16.mxu0 0
        %611 = vmatpush2.bf16.msra.mxu0 0
        %612 = vmatprep.subr.bf16.mxu0 0
        %613 = vmatpush2.bf16.msra.mxu0 0
        %614 = vmatprep.subr.bf16.mxu0 0
        %615 = vmatpush2.bf16.msra.mxu0 0
        %616 = vmatprep.subr.bf16.mxu0 0
        %617 = vmatpush2.bf16.msra.mxu0 0
        %618 = vmatprep.subr.bf16.mxu0 0
        %619 = vmatpush2.bf16.msra.mxu0 0
        %620 = vmatprep.mubr.bf16.mxu0 0
        %621 = vmatmul.mubr.bf16.gmra.mxu0 %v529
        %v622 = vpop.f32.mrf.mxu0
        %v623 = vadd.f32 0.0, %v622
        %v624 = vpop.f32.mrf.mxu0
        %v625 = vadd.f32 0.0, %v624
        %v626 = vpop.f32.mrf.mxu0
        %v627 = vadd.f32 0.0, %v626
        %v628 = vpop.f32.mrf.mxu0
        %v629 = vadd.f32 0.0, %v628
        %630 = vmatprep.mubr.bf16.mxu0 0
        %631 = vmatmul.mubr.bf16.gmra.mxu0 %v532
        %v632 = vpop.f32.mrf.mxu0
        %v633 = vadd.f32 0.0, %v632
        %v634 = vpop.f32.mrf.mxu0
        %v635 = vadd.f32 0.0, %v634
        %v636 = vpop.f32.mrf.mxu0
        %v637 = vadd.f32 0.0, %v636
        %v638 = vpop.f32.mrf.mxu0
        %v639 = vadd.f32 0.0, %v638
        %640 = vmatprep.mubr.bf16.mxu0 0
        %641 = vmatmul.mubr.bf16.gmra.mxu0 %v535
        %v642 = vpop.f32.mrf.mxu0
        %v643 = vadd.f32 0.0, %v642
        %v644 = vpop.f32.mrf.mxu0
        %v645 = vadd.f32 0.0, %v644
        %v646 = vpop.f32.mrf.mxu0
        %v647 = vadd.f32 0.0, %v646
        %v648 = vpop.f32.mrf.mxu0
        %v649 = vadd.f32 0.0, %v648
        %650 = vmatprep.mubr.bf16.mxu0 0
        %651 = vmatmul.mubr.bf16.gmra.mxu0 %v538
        %v652 = vpop.f32.mrf.mxu0
        %v653 = vadd.f32 0.0, %v652
        %v654 = vpop.f32.mrf.mxu0
        %v655 = vadd.f32 0.0, %v654
        %v656 = vpop.f32.mrf.mxu0
        %v657 = vadd.f32 0.0, %v656
        %v658 = vpop.f32.mrf.mxu0
        %v659 = vadd.f32 0.0, %v658
        %660 = vmatprep.mubr.bf16.mxu0 0
        %661 = vmatmul.mubr.bf16.gmra.mxu0 %v541
        %v662 = vpop.f32.mrf.mxu0
        %v663 = vadd.f32 0.0, %v662
        %v664 = vpop.f32.mrf.mxu0
        %v665 = vadd.f32 0.0, %v664
        %v666 = vpop.f32.mrf.mxu0
        %v667 = vadd.f32 0.0, %v666
        %v668 = vpop.f32.mrf.mxu0
        %v669 = vadd.f32 0.0, %v668
        %670 = vmatprep.mubr.bf16.mxu0 0
        %671 = vmatmul.mubr.bf16.gmra.mxu0 %v544
        %v672 = vpop.f32.mrf.mxu0
        %v673 = vadd.f32 0.0, %v672
        %v674 = vpop.f32.mrf.mxu0
        %v675 = vadd.f32 0.0, %v674
        %v676 = vpop.f32.mrf.mxu0
        %v677 = vadd.f32 0.0, %v676
        %v678 = vpop.f32.mrf.mxu0
        %v679 = vadd.f32 0.0, %v678
        %680 = vmatprep.mubr.bf16.mxu0 0
        %681 = vmatmul.mubr.bf16.gmra.mxu0 %v547
        %v682 = vpop.f32.mrf.mxu0
        %v683 = vadd.f32 0.0, %v682
        %v684 = vpop.f32.mrf.mxu0
        %v685 = vadd.f32 0.0, %v684
        %v686 = vpop.f32.mrf.mxu0
        %v687 = vadd.f32 0.0, %v686
        %v688 = vpop.f32.mrf.mxu0
        %v689 = vadd.f32 0.0, %v688
        %690 = vmatprep.mubr.bf16.mxu0 0
        %691 = vmatmul.mubr.bf16.gmra.mxu0 %v550
        %v692 = vpop.f32.mrf.mxu0
        %v693 = vadd.f32 0.0, %v692
        %v694 = vpop.f32.mrf.mxu0
        %v695 = vadd.f32 0.0, %v694
        %v696 = vpop.f32.mrf.mxu0
        %v697 = vadd.f32 0.0, %v696
        %v698 = vpop.f32.mrf.mxu0
        %v699 = vadd.f32 0.0, %v698
        %700 = vmatprep.mubr.bf16.mxu0 0
        %701 = vmatmul.mubr.bf16.gmra.mxu0 %v553
        %v702 = vpop.f32.mrf.mxu0
        %v703 = vadd.f32 0.0, %v702
        %v704 = vpop.f32.mrf.mxu0
        %v705 = vadd.f32 0.0, %v704
        %v706 = vpop.f32.mrf.mxu0
        %v707 = vadd.f32 0.0, %v706
        %v708 = vpop.f32.mrf.mxu0
        %v709 = vadd.f32 0.0, %v708
        %710 = vmatprep.mubr.bf16.mxu0 0
        %711 = vmatmul.mubr.bf16.gmra.mxu0 %v556
        %v712 = vpop.f32.mrf.mxu0
        %v713 = vadd.f32 0.0, %v712
        %v714 = vpop.f32.mrf.mxu0
        %v715 = vadd.f32 0.0, %v714
        %v716 = vpop.f32.mrf.mxu0
        %v717 = vadd.f32 0.0, %v716
        %v718 = vpop.f32.mrf.mxu0
        %v719 = vadd.f32 0.0, %v718
        %720 = vmatprep.mubr.bf16.mxu0 0
        %721 = vmatmul.mubr.bf16.gmra.mxu0 %v559
        %v722 = vpop.f32.mrf.mxu0
        %v723 = vadd.f32 0.0, %v722
        %v724 = vpop.f32.mrf.mxu0
        %v725 = vadd.f32 0.0, %v724
        %v726 = vpop.f32.mrf.mxu0
        %v727 = vadd.f32 0.0, %v726
        %v728 = vpop.f32.mrf.mxu0
        %v729 = vadd.f32 0.0, %v728
        %730 = vmatprep.mubr.bf16.mxu0 0
        %731 = vmatmul.mubr.bf16.gmra.mxu0 %v562
        %v732 = vpop.f32.mrf.mxu0
        %v733 = vadd.f32 0.0, %v732
        %v734 = vpop.f32.mrf.mxu0
        %v735 = vadd.f32 0.0, %v734
        %v736 = vpop.f32.mrf.mxu0
        %v737 = vadd.f32 0.0, %v736
        %v738 = vpop.f32.mrf.mxu0
        %v739 = vadd.f32 0.0, %v738
        %740 = vmatprep.mubr.bf16.mxu0 0
        %741 = vmatmul.mubr.bf16.gmra.mxu0 %v565
        %v742 = vpop.f32.mrf.mxu0
        %v743 = vadd.f32 0.0, %v742
        %v744 = vpop.f32.mrf.mxu0
        %v745 = vadd.f32 0.0, %v744
        %v746 = vpop.f32.mrf.mxu0
        %v747 = vadd.f32 0.0, %v746
        %v748 = vpop.f32.mrf.mxu0
        %v749 = vadd.f32 0.0, %v748
        %750 = vmatprep.mubr.bf16.mxu0 0
        %751 = vmatmul.mubr.bf16.gmra.mxu0 %v568
        %v752 = vpop.f32.mrf.mxu0
        %v753 = vadd.f32 0.0, %v752
        %v754 = vpop.f32.mrf.mxu0
        %v755 = vadd.f32 0.0, %v754
        %v756 = vpop.f32.mrf.mxu0
        %v757 = vadd.f32 0.0, %v756
        %v758 = vpop.f32.mrf.mxu0
        %v759 = vadd.f32 0.0, %v758
        %760 = vmatprep.mubr.bf16.mxu0 0
        %761 = vmatmul.mubr.bf16.gmra.mxu0 %v571
        %v762 = vpop.f32.mrf.mxu0
        %v763 = vadd.f32 0.0, %v762
        %v764 = vpop.f32.mrf.mxu0
        %v765 = vadd.f32 0.0, %v764
        %v766 = vpop.f32.mrf.mxu0
        %v767 = vadd.f32 0.0, %v766
        %v768 = vpop.f32.mrf.mxu0
        %v769 = vadd.f32 0.0, %v768
        %770 = vmatprep.mubr.bf16.mxu0 0
        %771 = vmatmul.mubr.bf16.gmra.mxu0 %v574
        %v772 = vpop.f32.mrf.mxu0
        %v773 = vadd.f32 0.0, %v772
        %v774 = vpop.f32.mrf.mxu0
        %v775 = vadd.f32 0.0, %v774
        %v776 = vpop.f32.mrf.mxu0
        %v777 = vadd.f32 0.0, %v776
        %v778 = vpop.f32.mrf.mxu0
        %v779 = vadd.f32 0.0, %v778
        %780 = vmatprep.mubr.bf16.mxu0 0
        %781 = vmatmul.mubr.bf16.gmra.mxu0 %v577
        %v782 = vpop.f32.mrf.mxu0
        %v783 = vadd.f32 0.0, %v782
        %v784 = vpop.f32.mrf.mxu0
        %v785 = vadd.f32 0.0, %v784
        %v786 = vpop.f32.mrf.mxu0
        %v787 = vadd.f32 0.0, %v786
        %v788 = vpop.f32.mrf.mxu0
        %v789 = vadd.f32 0.0, %v788
        %790 = vmatprep.mubr.bf16.mxu0 0
        %791 = vmatmul.mubr.bf16.gmra.mxu0 %v580
        %v792 = vpop.f32.mrf.mxu0
        %v793 = vadd.f32 0.0, %v792
        %v794 = vpop.f32.mrf.mxu0
        %v795 = vadd.f32 0.0, %v794
        %v796 = vpop.f32.mrf.mxu0
        %v797 = vadd.f32 0.0, %v796
        %v798 = vpop.f32.mrf.mxu0
        %v799 = vadd.f32 0.0, %v798
        %800 = vmatprep.mubr.bf16.mxu0 0
        %801 = vmatmul.mubr.bf16.gmra.mxu0 %v583
        %v802 = vpop.f32.mrf.mxu0
        %v803 = vadd.f32 0.0, %v802
        %v804 = vpop.f32.mrf.mxu0
        %v805 = vadd.f32 0.0, %v804
        %v806 = vpop.f32.mrf.mxu0
        %v807 = vadd.f32 0.0, %v806
        %v808 = vpop.f32.mrf.mxu0
        %v809 = vadd.f32 0.0, %v808
        %810 = vmatprep.mubr.bf16.mxu0 0
        %811 = vmatmul.mubr.bf16.gmra.mxu0 %v586
        %v812 = vpop.f32.mrf.mxu0
        %v813 = vadd.f32 0.0, %v812
        %v814 = vpop.f32.mrf.mxu0
        %v815 = vadd.f32 0.0, %v814
        %v816 = vpop.f32.mrf.mxu0
        %v817 = vadd.f32 0.0, %v816
        %v818 = vpop.f32.mrf.mxu0
        %v819 = vadd.f32 0.0, %v818
        %820 = vdwg.mxu0
        %821 = vmatprep.subr.bf16.mxu0 0
        %822 = vmatpush1.bf16.msra.mxu0 0
        %823 = vmatprep.subr.bf16.mxu0 0
        %824 = vmatpush1.bf16.msra.mxu0 0
        %825 = vmatprep.subr.bf16.mxu0 0
        %826 = vmatpush1.bf16.msra.mxu0 0
        %827 = vmatprep.subr.bf16.mxu0 0
        %828 = vmatpush1.bf16.msra.mxu0 0
        %829 = vmatprep.subr.bf16.mxu0 0
        %830 = vmatpush1.bf16.msra.mxu0 0
        %831 = vmatprep.subr.bf16.mxu0 0
        %832 = vmatpush1.bf16.msra.mxu0 0
        %833 = vmatprep.subr.bf16.mxu0 0
        %834 = vmatpush1.bf16.msra.mxu0 0
        %835 = vmatprep.subr.bf16.mxu0 0
        %836 = vmatpush1.bf16.msra.mxu0 %v381
        %837 = vmatprep.subr.bf16.mxu0 0
        %838 = vmatpush2.bf16.msra.mxu0 0
        %839 = vmatprep.subr.bf16.mxu0 0
        %840 = vmatpush2.bf16.msra.mxu0 0
        %841 = vmatprep.subr.bf16.mxu0 0
        %842 = vmatpush2.bf16.msra.mxu0 0
        %843 = vmatprep.subr.bf16.mxu0 0
        %844 = vmatpush2.bf16.msra.mxu0 0
        %845 = vmatprep.subr.bf16.mxu0 0
        %846 = vmatpush2.bf16.msra.mxu0 0
        %847 = vmatprep.subr.bf16.mxu0 0
        %848 = vmatpush2.bf16.msra.mxu0 0
        %849 = vmatprep.subr.bf16.mxu0 0
        %850 = vmatpush2.bf16.msra.mxu0 0
        %851 = vmatprep.subr.bf16.mxu0 0
        %852 = vmatpush2.bf16.msra.mxu0 0
        %853 = vmatprep.mubr.bf16.mxu0 0
        %854 = vmatmul.mubr.bf16.gmra.mxu0 %v529
        %v855 = vpop.f32.mrf.mxu0
        %v856 = vadd.f32 0.0, %v855
        %v857 = vpop.f32.mrf.mxu0
        %v858 = vpop.f32.mrf.mxu0
        %v859 = vadd.f32 0.0, %v858
        %v860 = vpop.f32.mrf.mxu0
        %861 = vmatprep.mubr.bf16.mxu0 0
        %862 = vmatmul.mubr.bf16.gmra.mxu0 %v532
        %v863 = vpop.f32.mrf.mxu0
        %v864 = vadd.f32 0.0, %v863
        %v865 = vpop.f32.mrf.mxu0
        %v866 = vpop.f32.mrf.mxu0
        %v867 = vadd.f32 0.0, %v866
        %v868 = vpop.f32.mrf.mxu0
        %869 = vmatprep.mubr.bf16.mxu0 0
        %870 = vmatmul.mubr.bf16.gmra.mxu0 %v535
        %v871 = vpop.f32.mrf.mxu0
        %v872 = vadd.f32 0.0, %v871
        %v873 = vpop.f32.mrf.mxu0
        %v874 = vpop.f32.mrf.mxu0
        %v875 = vadd.f32 0.0, %v874
        %v876 = vpop.f32.mrf.mxu0
        %877 = vmatprep.mubr.bf16.mxu0 0
        %878 = vmatmul.mubr.bf16.gmra.mxu0 %v538
        %v879 = vpop.f32.mrf.mxu0
        %v880 = vadd.f32 0.0, %v879
        %v881 = vpop.f32.mrf.mxu0
        %v882 = vpop.f32.mrf.mxu0
        %v883 = vadd.f32 0.0, %v882
        %v884 = vpop.f32.mrf.mxu0
        %885 = vmatprep.mubr.bf16.mxu0 0
        %886 = vmatmul.mubr.bf16.gmra.mxu0 %v541
        %v887 = vpop.f32.mrf.mxu0
        %v888 = vadd.f32 0.0, %v887
        %v889 = vpop.f32.mrf.mxu0
        %v890 = vpop.f32.mrf.mxu0
        %v891 = vadd.f32 0.0, %v890
        %v892 = vpop.f32.mrf.mxu0
        %893 = vmatprep.mubr.bf16.mxu0 0
        %894 = vmatmul.mubr.bf16.gmra.mxu0 %v544
        %v895 = vpop.f32.mrf.mxu0
        %v896 = vadd.f32 0.0, %v895
        %v897 = vpop.f32.mrf.mxu0
        %v898 = vpop.f32.mrf.mxu0
        %v899 = vadd.f32 0.0, %v898
        %v900 = vpop.f32.mrf.mxu0
        %901 = vmatprep.mubr.bf16.mxu0 0
        %902 = vmatmul.mubr.bf16.gmra.mxu0 %v547
        %v903 = vpop.f32.mrf.mxu0
        %v904 = vadd.f32 0.0, %v903
        %v905 = vpop.f32.mrf.mxu0
        %v906 = vpop.f32.mrf.mxu0
        %v907 = vadd.f32 0.0, %v906
        %v908 = vpop.f32.mrf.mxu0
        %909 = vmatprep.mubr.bf16.mxu0 0
        %910 = vmatmul.mubr.bf16.gmra.mxu0 %v550
        %v911 = vpop.f32.mrf.mxu0
        %v912 = vadd.f32 0.0, %v911
        %v913 = vpop.f32.mrf.mxu0
        %v914 = vpop.f32.mrf.mxu0
        %v915 = vadd.f32 0.0, %v914
        %v916 = vpop.f32.mrf.mxu0
        %917 = vmatprep.mubr.bf16.mxu0 0
        %918 = vmatmul.mubr.bf16.gmra.mxu0 %v553
        %v919 = vpop.f32.mrf.mxu0
        %v920 = vadd.f32 0.0, %v919
        %v921 = vpop.f32.mrf.mxu0
        %v922 = vpop.f32.mrf.mxu0
        %v923 = vadd.f32 0.0, %v922
        %v924 = vpop.f32.mrf.mxu0
        %925 = vmatprep.mubr.bf16.mxu0 0
        %926 = vmatmul.mubr.bf16.gmra.mxu0 %v556
        %v927 = vpop.f32.mrf.mxu0
        %v928 = vadd.f32 0.0, %v927
        %v929 = vpop.f32.mrf.mxu0
        %v930 = vpop.f32.mrf.mxu0
        %v931 = vadd.f32 0.0, %v930
        %v932 = vpop.f32.mrf.mxu0
        %933 = vmatprep.mubr.bf16.mxu0 0
        %934 = vmatmul.mubr.bf16.gmra.mxu0 %v559
        %v935 = vpop.f32.mrf.mxu0
        %v936 = vadd.f32 0.0, %v935
        %v937 = vpop.f32.mrf.mxu0
        %v938 = vpop.f32.mrf.mxu0
        %v939 = vadd.f32 0.0, %v938
        %v940 = vpop.f32.mrf.mxu0
        %941 = vmatprep.mubr.bf16.mxu0 0
        %942 = vmatmul.mubr.bf16.gmra.mxu0 %v562
        %v943 = vpop.f32.mrf.mxu0
        %v944 = vadd.f32 0.0, %v943
        %v945 = vpop.f32.mrf.mxu0
        %v946 = vpop.f32.mrf.mxu0
        %v947 = vadd.f32 0.0, %v946
        %v948 = vpop.f32.mrf.mxu0
        %949 = vmatprep.mubr.bf16.mxu0 0
        %950 = vmatmul.mubr.bf16.gmra.mxu0 %v565
        %v951 = vpop.f32.mrf.mxu0
        %v952 = vadd.f32 0.0, %v951
        %v953 = vpop.f32.mrf.mxu0
        %v954 = vpop.f32.mrf.mxu0
        %v955 = vadd.f32 0.0, %v954
        %v956 = vpop.f32.mrf.mxu0
        %957 = vmatprep.mubr.bf16.mxu0 0
        %958 = vmatmul.mubr.bf16.gmra.mxu0 %v568
        %v959 = vpop.f32.mrf.mxu0
        %v960 = vadd.f32 0.0, %v959
        %v961 = vpop.f32.mrf.mxu0
        %v962 = vpop.f32.mrf.mxu0
        %v963 = vadd.f32 0.0, %v962
        %v964 = vpop.f32.mrf.mxu0
        %965 = vmatprep.mubr.bf16.mxu0 0
        %966 = vmatmul.mubr.bf16.gmra.mxu0 %v571
        %v967 = vpop.f32.mrf.mxu0
        %v968 = vadd.f32 0.0, %v967
        %v969 = vpop.f32.mrf.mxu0
        %v970 = vpop.f32.mrf.mxu0
        %v971 = vadd.f32 0.0, %v970
        %v972 = vpop.f32.mrf.mxu0
        %973 = vmatprep.mubr.bf16.mxu0 0
        %974 = vmatmul.mubr.bf16.gmra.mxu0 %v574
        %v975 = vpop.f32.mrf.mxu0
        %v976 = vadd.f32 0.0, %v975
        %v977 = vpop.f32.mrf.mxu0
        %v978 = vpop.f32.mrf.mxu0
        %v979 = vadd.f32 0.0, %v978
        %v980 = vpop.f32.mrf.mxu0
        %981 = vmatprep.mubr.bf16.mxu0 0
        %982 = vmatmul.mubr.bf16.gmra.mxu0 %v577
        %v983 = vpop.f32.mrf.mxu0
        %v984 = vadd.f32 0.0, %v983
        %v985 = vpop.f32.mrf.mxu0
        %v986 = vpop.f32.mrf.mxu0
        %v987 = vadd.f32 0.0, %v986
        %v988 = vpop.f32.mrf.mxu0
        %989 = vmatprep.mubr.bf16.mxu0 0
        %990 = vmatmul.mubr.bf16.gmra.mxu0 %v580
        %v991 = vpop.f32.mrf.mxu0
        %v992 = vadd.f32 0.0, %v991
        %v993 = vpop.f32.mrf.mxu0
        %v994 = vpop.f32.mrf.mxu0
        %v995 = vadd.f32 0.0, %v994
        %v996 = vpop.f32.mrf.mxu0
        %997 = vmatprep.mubr.bf16.mxu0 0
        %998 = vmatmul.mubr.bf16.gmra.mxu0 %v583
        %v999 = vpop.f32.mrf.mxu0
        %v1000 = vadd.f32 0.0, %v999
        %v1001 = vpop.f32.mrf.mxu0
        %v1002 = vpop.f32.mrf.mxu0
        %v1003 = vadd.f32 0.0, %v1002
        %v1004 = vpop.f32.mrf.mxu0
        %1005 = vmatprep.mubr.bf16.mxu0 0
        %1006 = vmatmul.mubr.bf16.gmra.mxu0 %v586
        %v1007 = vpop.f32.mrf.mxu0
        %v1008 = vadd.f32 0.0, %v1007
        %v1009 = vpop.f32.mrf.mxu0
        %v1010 = vpop.f32.mrf.mxu0
        %v1011 = vadd.f32 0.0, %v1010
        %v1012 = vpop.f32.mrf.mxu0
        %1013 = vdwg.mxu0
        %v1014 = vpack.c.bf16 %v627, %v623
        %v1015 = vpack.c.bf16 %v629, %v625
        %v1016 = vpack.c.bf16 %v859, %v856
        %v1017 = vpack.c.bf16 %v637, %v633
        %v1018 = vpack.c.bf16 %v639, %v635
        %v1019 = vpack.c.bf16 %v867, %v864
        %v1020 = vpack.c.bf16 %v647, %v643
        %v1021 = vpack.c.bf16 %v649, %v645
        %v1022 = vpack.c.bf16 %v875, %v872
        %v1023 = vpack.c.bf16 %v657, %v653
        %v1024 = vpack.c.bf16 %v659, %v655
        %v1025 = vpack.c.bf16 %v883, %v880
        %v1026 = vpack.c.bf16 %v667, %v663
        %v1027 = vpack.c.bf16 %v669, %v665
        %v1028 = vpack.c.bf16 %v891, %v888
        %v1029 = vpack.c.bf16 %v677, %v673
        %v1030 = vpack.c.bf16 %v679, %v675
        %v1031 = vpack.c.bf16 %v899, %v896
        %v1032 = vpack.c.bf16 %v687, %v683
        %v1033 = vpack.c.bf16 %v689, %v685
        %v1034 = vpack.c.bf16 %v907, %v904
        %v1035 = vpack.c.bf16 %v697, %v693
        %v1036 = vpack.c.bf16 %v699, %v695
        %v1037 = vpack.c.bf16 %v915, %v912
        %v1038 = vpack.c.bf16 %v707, %v703
        %v1039 = vpack.c.bf16 %v709, %v705
        %v1040 = vpack.c.bf16 %v923, %v920
        %v1041 = vpack.c.bf16 %v717, %v713
        %v1042 = vpack.c.bf16 %v719, %v715
        %v1043 = vpack.c.bf16 %v931, %v928
        %v1044 = vpack.c.bf16 %v727, %v723
        %v1045 = vpack.c.bf16 %v729, %v725
        %v1046 = vpack.c.bf16 %v939, %v936
        %v1047 = vpack.c.bf16 %v737, %v733
        %v1048 = vpack.c.bf16 %v739, %v735
        %v1049 = vpack.c.bf16 %v947, %v944
        %v1050 = vpack.c.bf16 %v747, %v743
        %v1051 = vpack.c.bf16 %v749, %v745
        %v1052 = vpack.c.bf16 %v955, %v952
        %v1053 = vpack.c.bf16 %v757, %v753
        %v1054 = vpack.c.bf16 %v759, %v755
        %v1055 = vpack.c.bf16 %v963, %v960
        %v1056 = vpack.c.bf16 %v767, %v763
        %v1057 = vpack.c.bf16 %v769, %v765
        %v1058 = vpack.c.bf16 %v971, %v968
        %v1059 = vpack.c.bf16 %v777, %v773
        %v1060 = vpack.c.bf16 %v779, %v775
        %v1061 = vpack.c.bf16 %v979, %v976
        %v1062 = vpack.c.bf16 %v787, %v783
        %v1063 = vpack.c.bf16 %v789, %v785
        %v1064 = vpack.c.bf16 %v987, %v984
        %v1065 = vpack.c.bf16 %v797, %v793
        %v1066 = vpack.c.bf16 %v799, %v795
        %v1067 = vpack.c.bf16 %v995, %v992
        %v1068 = vpack.c.bf16 %v807, %v803
        %v1069 = vpack.c.bf16 %v809, %v805
        %v1070 = vpack.c.bf16 %v1003, %v1000
        %v1071 = vpack.c.bf16 %v817, %v813
        %v1072 = vpack.c.bf16 %v819, %v815
        %v1073 = vpack.c.bf16 %v1011, %v1008
        %v1134 = vunpack.c.l.b16 %v1014
        %v1135 = vunpack.c.l.b16 %v1015
        %v1136 = vunpack.c.l.b16 %v1016
        %v1137 = vunpack.c.h.b16 %v1014
        %v1138 = vunpack.c.h.b16 %v1015
        %v1139 = vunpack.c.h.b16 %v1016
        %v1140 = vunpack.c.l.b16 %v1017
        %v1141 = vunpack.c.l.b16 %v1018
        %v1142 = vunpack.c.l.b16 %v1019
        %v1143 = vunpack.c.h.b16 %v1017
        %v1144 = vunpack.c.h.b16 %v1018
        %v1145 = vunpack.c.h.b16 %v1019
        %v1146 = vunpack.c.l.b16 %v1020
        %v1147 = vunpack.c.l.b16 %v1021
        %v1148 = vunpack.c.l.b16 %v1022
        %v1149 = vunpack.c.h.b16 %v1020
        %v1150 = vunpack.c.h.b16 %v1021
        %v1151 = vunpack.c.h.b16 %v1022
        %v1152 = vunpack.c.l.b16 %v1023
        %v1153 = vunpack.c.l.b16 %v1024
        %v1154 = vunpack.c.l.b16 %v1025
        %v1155 = vunpack.c.h.b16 %v1023
        %v1156 = vunpack.c.h.b16 %v1024
        %v1157 = vunpack.c.h.b16 %v1025
        %v1158 = vunpack.c.l.b16 %v1026
        %v1159 = vunpack.c.l.b16 %v1027
        %v1160 = vunpack.c.l.b16 %v1028
        %v1161 = vunpack.c.h.b16 %v1026
        %v1162 = vunpack.c.h.b16 %v1027
        %v1163 = vunpack.c.h.b16 %v1028
        %v1164 = vunpack.c.l.b16 %v1029
        %v1165 = vunpack.c.l.b16 %v1030
        %v1166 = vunpack.c.l.b16 %v1031
        %v1167 = vunpack.c.h.b16 %v1029
        %v1168 = vunpack.c.h.b16 %v1030
        %v1169 = vunpack.c.h.b16 %v1031
        %v1170 = vunpack.c.l.b16 %v1032
        %v1171 = vunpack.c.l.b16 %v1033
        %v1172 = vunpack.c.l.b16 %v1034
        %v1173 = vunpack.c.h.b16 %v1032
        %v1174 = vunpack.c.h.b16 %v1033
        %v1175 = vunpack.c.h.b16 %v1034
        %v1176 = vunpack.c.l.b16 %v1035
        %v1177 = vunpack.c.l.b16 %v1036
        %v1178 = vunpack.c.l.b16 %v1037
        %v1179 = vunpack.c.h.b16 %v1035
        %v1180 = vunpack.c.h.b16 %v1036
        %v1181 = vunpack.c.h.b16 %v1037
        %v1182 = vunpack.c.l.b16 %v1038
        %v1183 = vunpack.c.l.b16 %v1039
        %v1184 = vunpack.c.l.b16 %v1040
        %v1185 = vunpack.c.h.b16 %v1038
        %v1186 = vunpack.c.h.b16 %v1039
        %v1187 = vunpack.c.h.b16 %v1040
        %v1188 = vunpack.c.l.b16 %v1041
        %v1189 = vunpack.c.l.b16 %v1042
        %v1190 = vunpack.c.l.b16 %v1043
        %v1191 = vunpack.c.h.b16 %v1041
        %v1192 = vunpack.c.h.b16 %v1042
        %v1193 = vunpack.c.h.b16 %v1043
        %v1194 = vunpack.c.l.b16 %v1044
        %v1195 = vunpack.c.l.b16 %v1045
        %v1196 = vunpack.c.l.b16 %v1046
        %v1197 = vunpack.c.h.b16 %v1044
        %v1198 = vunpack.c.h.b16 %v1045
        %v1199 = vunpack.c.h.b16 %v1046
        %v1200 = vunpack.c.l.b16 %v1047
        %v1201 = vunpack.c.l.b16 %v1048
        %v1202 = vunpack.c.l.b16 %v1049
        %v1203 = vunpack.c.h.b16 %v1047
        %v1204 = vunpack.c.h.b16 %v1048
        %v1205 = vunpack.c.h.b16 %v1049
        %v1206 = vunpack.c.l.b16 %v1050
        %v1207 = vunpack.c.l.b16 %v1051
        %v1208 = vunpack.c.l.b16 %v1052
        %v1209 = vunpack.c.h.b16 %v1050
        %v1210 = vunpack.c.h.b16 %v1051
        %v1211 = vunpack.c.h.b16 %v1052
        %v1212 = vunpack.c.l.b16 %v1053
        %v1213 = vunpack.c.l.b16 %v1054
        %v1214 = vunpack.c.l.b16 %v1055
        %v1215 = vunpack.c.h.b16 %v1053
        %v1216 = vunpack.c.h.b16 %v1054
        %v1217 = vunpack.c.h.b16 %v1055
        %v1218 = vunpack.c.l.b16 %v1056
        %v1219 = vunpack.c.l.b16 %v1057
        %v1220 = vunpack.c.l.b16 %v1058
        %v1221 = vunpack.c.h.b16 %v1056
        %v1222 = vunpack.c.h.b16 %v1057
        %v1223 = vunpack.c.h.b16 %v1058
        %v1224 = vunpack.c.l.b16 %v1059
        %v1225 = vunpack.c.l.b16 %v1060
        %v1226 = vunpack.c.l.b16 %v1061
        %v1227 = vunpack.c.h.b16 %v1059
        %v1228 = vunpack.c.h.b16 %v1060
        %v1229 = vunpack.c.h.b16 %v1061
        %v1230 = vunpack.c.l.b16 %v1062
        %v1231 = vunpack.c.l.b16 %v1063
        %v1232 = vunpack.c.l.b16 %v1064
        %v1233 = vunpack.c.h.b16 %v1062
        %v1234 = vunpack.c.h.b16 %v1063
        %v1235 = vunpack.c.h.b16 %v1064
        %v1236 = vunpack.c.l.b16 %v1065
        %v1237 = vunpack.c.l.b16 %v1066
        %v1238 = vunpack.c.l.b16 %v1067
        %v1239 = vunpack.c.h.b16 %v1065
        %v1240 = vunpack.c.h.b16 %v1066
        %v1241 = vunpack.c.h.b16 %v1067
        %v1242 = vunpack.c.l.b16 %v1068
        %v1243 = vunpack.c.l.b16 %v1069
        %v1244 = vunpack.c.l.b16 %v1070
        %v1245 = vunpack.c.h.b16 %v1068
        %v1246 = vunpack.c.h.b16 %v1069
        %v1247 = vunpack.c.h.b16 %v1070
        %v1248 = vunpack.c.l.b16 %v1071
        %v1249 = vunpack.c.l.b16 %v1072
        %v1250 = vunpack.c.l.b16 %v1073
        %v1251 = vunpack.c.h.b16 %v1071
        %v1252 = vunpack.c.h.b16 %v1072
        %v1253 = vunpack.c.h.b16 %v1073
        %v1254 = vpack.c.b16 %v1135, %v1134
        %v1255 = vpack.c.b16 %v1136, %v1136
        %v1256 = vpack.c.b16 %v1138, %v1137
        %v1257 = vpack.c.b16 %v1139, %v1139
        %v1258 = vpack.c.b16 %v1141, %v1140
        %v1259 = vpack.c.b16 %v1142, %v1142
        %v1260 = vpack.c.b16 %v1144, %v1143
        %v1261 = vpack.c.b16 %v1145, %v1145
        %v1262 = vpack.c.b16 %v1147, %v1146
        %v1263 = vpack.c.b16 %v1148, %v1148
        %v1264 = vpack.c.b16 %v1150, %v1149
        %v1265 = vpack.c.b16 %v1151, %v1151
        %v1266 = vpack.c.b16 %v1153, %v1152
        %v1267 = vpack.c.b16 %v1154, %v1154
        %v1268 = vpack.c.b16 %v1156, %v1155
        %v1269 = vpack.c.b16 %v1157, %v1157
        %v1270 = vpack.c.b16 %v1159, %v1158
        %v1271 = vpack.c.b16 %v1160, %v1160
        %v1272 = vpack.c.b16 %v1162, %v1161
        %v1273 = vpack.c.b16 %v1163, %v1163
        %v1274 = vpack.c.b16 %v1165, %v1164
        %v1275 = vpack.c.b16 %v1166, %v1166
        %v1276 = vpack.c.b16 %v1168, %v1167
        %v1277 = vpack.c.b16 %v1169, %v1169
        %v1278 = vpack.c.b16 %v1171, %v1170
        %v1279 = vpack.c.b16 %v1172, %v1172
        %v1280 = vpack.c.b16 %v1174, %v1173
        %v1281 = vpack.c.b16 %v1175, %v1175
        %v1282 = vpack.c.b16 %v1177, %v1176
        %v1283 = vpack.c.b16 %v1178, %v1178
        %v1284 = vpack.c.b16 %v1180, %v1179
        %v1285 = vpack.c.b16 %v1181, %v1181
        %v1286 = vpack.c.b16 %v1183, %v1182
        %v1287 = vpack.c.b16 %v1184, %v1184
        %v1288 = vpack.c.b16 %v1186, %v1185
        %v1289 = vpack.c.b16 %v1187, %v1187
        %v1290 = vpack.c.b16 %v1189, %v1188
        %v1291 = vpack.c.b16 %v1190, %v1190
        %v1292 = vpack.c.b16 %v1192, %v1191
        %v1293 = vpack.c.b16 %v1193, %v1193
        %v1294 = vpack.c.b16 %v1195, %v1194
        %v1295 = vpack.c.b16 %v1196, %v1196
        %v1296 = vpack.c.b16 %v1198, %v1197
        %v1297 = vpack.c.b16 %v1199, %v1199
        %v1298 = vpack.c.b16 %v1201, %v1200
        %v1299 = vpack.c.b16 %v1202, %v1202
        %v1300 = vpack.c.b16 %v1204, %v1203
        %v1301 = vpack.c.b16 %v1205, %v1205
        %v1302 = vpack.c.b16 %v1207, %v1206
        %v1303 = vpack.c.b16 %v1208, %v1208
        %v1304 = vpack.c.b16 %v1210, %v1209
        %v1305 = vpack.c.b16 %v1211, %v1211
        %v1306 = vpack.c.b16 %v1213, %v1212
        %v1307 = vpack.c.b16 %v1214, %v1214
        %v1308 = vpack.c.b16 %v1216, %v1215
        %v1309 = vpack.c.b16 %v1217, %v1217
        %v1310 = vpack.c.b16 %v1219, %v1218
        %v1311 = vpack.c.b16 %v1220, %v1220
        %v1312 = vpack.c.b16 %v1222, %v1221
        %v1313 = vpack.c.b16 %v1223, %v1223
        %v1314 = vpack.c.b16 %v1225, %v1224
        %v1315 = vpack.c.b16 %v1226, %v1226
        %v1316 = vpack.c.b16 %v1228, %v1227
        %v1317 = vpack.c.b16 %v1229, %v1229
        %v1318 = vpack.c.b16 %v1231, %v1230
        %v1319 = vpack.c.b16 %v1232, %v1232
        %v1320 = vpack.c.b16 %v1234, %v1233
        %v1321 = vpack.c.b16 %v1235, %v1235
        %v1322 = vpack.c.b16 %v1237, %v1236
        %v1323 = vpack.c.b16 %v1238, %v1238
        %v1324 = vpack.c.b16 %v1240, %v1239
        %v1325 = vpack.c.b16 %v1241, %v1241
        %v1326 = vpack.c.b16 %v1243, %v1242
        %v1327 = vpack.c.b16 %v1244, %v1244
        %v1328 = vpack.c.b16 %v1246, %v1245
        %v1329 = vpack.c.b16 %v1247, %v1247
        %v1330 = vpack.c.b16 %v1249, %v1248
        %v1331 = vpack.c.b16 %v1250, %v1250
        %v1332 = vpack.c.b16 %v1252, %v1251
        %v1333 = vpack.c.b16 %v1253, %v1253
        %1414 = vst [vmem:[%s204] sm:$0xff] %v1254
        %vm1415 = vcmask 519168
        %1416 = vst.msk [vmem:[%s204 + $0x8] sm:$0xf] %vm1415, %v1255
        %1417 = vst [vmem:[%s204 + $0xc] sm:$0xff] %v1256
        %1418 = vst.msk [vmem:[%s204 + $0x14] sm:$0xf] %vm1415, %v1257
        %1419 = vst [vmem:[%s204 + $0x18] sm:$0xff] %v1258
        %1420 = vst.msk [vmem:[%s204 + $0x20] sm:$0xf] %vm1415, %v1259
        %1421 = vst [vmem:[%s204 + $0x24] sm:$0xff] %v1260
        %1422 = vst.msk [vmem:[%s204 + $0x2c] sm:$0xf] %vm1415, %v1261
        %1423 = vst [vmem:[%s204 + $0x30] sm:$0xff] %v1262
        %1424 = vst.msk [vmem:[%s204 + $0x38] sm:$0xf] %vm1415, %v1263
        %1425 = vst [vmem:[%s204 + $0x3c] sm:$0xff] %v1264
        %1426 = vst.msk [vmem:[%s204 + $0x44] sm:$0xf] %vm1415, %v1265
        %1427 = vst [vmem:[%s204 + $0x48] sm:$0xff] %v1266
        %1428 = vst.msk [vmem:[%s204 + $0x50] sm:$0xf] %vm1415, %v1267
        %1429 = vst [vmem:[%s204 + $0x54] sm:$0xff] %v1268
        %1430 = vst.msk [vmem:[%s204 + $0x5c] sm:$0xf] %vm1415, %v1269
        %1431 = vst [vmem:[%s204 + $0x60] sm:$0xff] %v1270
        %1432 = vst.msk [vmem:[%s204 + $0x68] sm:$0xf] %vm1415, %v1271
        %1433 = vst [vmem:[%s204 + $0x6c] sm:$0xff] %v1272
        %1434 = vst.msk [vmem:[%s204 + $0x74] sm:$0xf] %vm1415, %v1273
        %1435 = vst [vmem:[%s204 + $0x78] sm:$0xff] %v1274
        %1436 = vst.msk [vmem:[%s204 + $0x80] sm:$0xf] %vm1415, %v1275
        %1437 = vst [vmem:[%s204 + $0x84] sm:$0xff] %v1276
        %1438 = vst.msk [vmem:[%s204 + $0x8c] sm:$0xf] %vm1415, %v1277
        %1439 = vst [vmem:[%s204 + $0x90] sm:$0xff] %v1278
        %1440 = vst.msk [vmem:[%s204 + $0x98] sm:$0xf] %vm1415, %v1279
        %1441 = vst [vmem:[%s204 + $0x9c] sm:$0xff] %v1280
        %1442 = vst.msk [vmem:[%s204 + $0xa4] sm:$0xf] %vm1415, %v1281
        %1443 = vst [vmem:[%s204 + $0xa8] sm:$0xff] %v1282
        %1444 = vst.msk [vmem:[%s204 + $0xb0] sm:$0xf] %vm1415, %v1283
        %1445 = vst [vmem:[%s204 + $0xb4] sm:$0xff] %v1284
        %1446 = vst.msk [vmem:[%s204 + $0xbc] sm:$0xf] %vm1415, %v1285
        %1447 = vst [vmem:[%s204 + $0xc0] sm:$0xff] %v1286
        %1448 = vst.msk [vmem:[%s204 + $0xc8] sm:$0xf] %vm1415, %v1287
        %1449 = vst [vmem:[%s204 + $0xcc] sm:$0xff] %v1288
        %1450 = vst.msk [vmem:[%s204 + $0xd4] sm:$0xf] %vm1415, %v1289
        %1451 = vst [vmem:[%s204 + $0xd8] sm:$0xff] %v1290
        %1452 = vst.msk [vmem:[%s204 + $0xe0] sm:$0xf] %vm1415, %v1291
        %1453 = vst [vmem:[%s204 + $0xe4] sm:$0xff] %v1292
        %1454 = vst.msk [vmem:[%s204 + $0xec] sm:$0xf] %vm1415, %v1293
        %1455 = vst [vmem:[%s204 + $0xf0] sm:$0xff] %v1294
        %1456 = vst.msk [vmem:[%s204 + $0xf8] sm:$0xf] %vm1415, %v1295
        %1457 = vst [vmem:[%s204 + $0xfc] sm:$0xff] %v1296
        %1458 = vst.msk [vmem:[%s204 + $0x104] sm:$0xf] %vm1415, %v1297
        %1459 = vst [vmem:[%s204 + $0x108] sm:$0xff] %v1298
        %1460 = vst.msk [vmem:[%s204 + $0x110] sm:$0xf] %vm1415, %v1299
        %1461 = vst [vmem:[%s204 + $0x114] sm:$0xff] %v1300
        %1462 = vst.msk [vmem:[%s204 + $0x11c] sm:$0xf] %vm1415, %v1301
        %1463 = vst [vmem:[%s204 + $0x120] sm:$0xff] %v1302
        %1464 = vst.msk [vmem:[%s204 + $0x128] sm:$0xf] %vm1415, %v1303
        %1465 = vst [vmem:[%s204 + $0x12c] sm:$0xff] %v1304
        %1466 = vst.msk [vmem:[%s204 + $0x134] sm:$0xf] %vm1415, %v1305
        %1467 = vst [vmem:[%s204 + $0x138] sm:$0xff] %v1306
        %1468 = vst.msk [vmem:[%s204 + $0x140] sm:$0xf] %vm1415, %v1307
        %1469 = vst [vmem:[%s204 + $0x144] sm:$0xff] %v1308
        %1470 = vst.msk [vmem:[%s204 + $0x14c] sm:$0xf] %vm1415, %v1309
        %1471 = vst [vmem:[%s204 + $0x150] sm:$0xff] %v1310
        %1472 = vst.msk [vmem:[%s204 + $0x158] sm:$0xf] %vm1415, %v1311
        %1473 = vst [vmem:[%s204 + $0x15c] sm:$0xff] %v1312
        %1474 = vst.msk [vmem:[%s204 + $0x164] sm:$0xf] %vm1415, %v1313
        %1475 = vst [vmem:[%s204 + $0x168] sm:$0xff] %v1314
        %1476 = vst.msk [vmem:[%s204 + $0x170] sm:$0xf] %vm1415, %v1315
        %1477 = vst [vmem:[%s204 + $0x174] sm:$0xff] %v1316
        %1478 = vst.msk [vmem:[%s204 + $0x17c] sm:$0xf] %vm1415, %v1317
        %1479 = vst [vmem:[%s204 + $0x180] sm:$0xff] %v1318
        %1480 = vst.msk [vmem:[%s204 + $0x188] sm:$0xf] %vm1415, %v1319
        %1481 = vst [vmem:[%s204 + $0x18c] sm:$0xff] %v1320
        %1482 = vst.msk [vmem:[%s204 + $0x194] sm:$0xf] %vm1415, %v1321
        %1483 = vst [vmem:[%s204 + $0x198] sm:$0xff] %v1322
        %1484 = vst.msk [vmem:[%s204 + $0x1a0] sm:$0xf] %vm1415, %v1323
        %1485 = vst [vmem:[%s204 + $0x1a4] sm:$0xff] %v1324
        %1486 = vst.msk [vmem:[%s204 + $0x1ac] sm:$0xf] %vm1415, %v1325
        %1487 = vst [vmem:[%s204 + $0x1b0] sm:$0xff] %v1326
        %1488 = vst.msk [vmem:[%s204 + $0x1b8] sm:$0xf] %vm1415, %v1327
        %1489 = vst [vmem:[%s204 + $0x1bc] sm:$0xff] %v1328
        %1490 = vst.msk [vmem:[%s204 + $0x1c4] sm:$0xf] %vm1415, %v1329
        %1491 = vst [vmem:[%s204 + $0x1c8] sm:$0xff] %v1330
        %1492 = vst.msk [vmem:[%s204 + $0x1d0] sm:$0xf] %vm1415, %v1331
        %1493 = vst [vmem:[%s204 + $0x1d4] sm:$0xff] %v1332
        %1494 = vst.msk [vmem:[%s204 + $0x1dc] sm:$0xf] %vm1415, %v1333
        %1495 = vmatprep.subr.bf16.mxu0 0
        %1496 = vmatpush1.bf16.msra.mxu0 0
        %1497 = vmatprep.subr.bf16.mxu0 0
        %1498 = vmatpush1.bf16.msra.mxu0 0
        %1499 = vmatprep.subr.bf16.mxu0 0
        %1500 = vmatpush1.bf16.msra.mxu0 0
        %1501 = vmatprep.subr.bf16.mxu0 0
        %1502 = vmatpush1.bf16.msra.mxu0 0
        %1503 = vmatprep.subr.bf16.mxu0 0
        %1504 = vmatpush1.bf16.msra.mxu0 0
        %1505 = vmatprep.subr.bf16.mxu0 0
        %1506 = vmatpush1.bf16.msra.mxu0 0
        %1507 = vmatprep.subr.bf16.mxu0 0
        %1508 = vmatpush1.bf16.msra.mxu0 0
        %1509 = vmatprep.subr.bf16.mxu0 %v383
        %1510 = vmatpush1.bf16.msra.mxu0 %v382
        %1511 = vmatprep.subr.bf16.mxu0 0
        %1512 = vmatpush2.bf16.msra.mxu0 0
        %1513 = vmatprep.subr.bf16.mxu0 0
        %1514 = vmatpush2.bf16.msra.mxu0 0
        %1515 = vmatprep.subr.bf16.mxu0 0
        %1516 = vmatpush2.bf16.msra.mxu0 0
        %1517 = vmatprep.subr.bf16.mxu0 0
        %1518 = vmatpush2.bf16.msra.mxu0 0
        %1519 = vmatprep.subr.bf16.mxu0 0
        %1520 = vmatpush2.bf16.msra.mxu0 0
        %1521 = vmatprep.subr.bf16.mxu0 0
        %1522 = vmatpush2.bf16.msra.mxu0 0
        %1523 = vmatprep.subr.bf16.mxu0 0
        %1524 = vmatpush2.bf16.msra.mxu0 0
        %1525 = vmatprep.subr.bf16.mxu0 0
        %1526 = vmatpush2.bf16.msra.mxu0 0
        %1527 = vmatprep.mubr.bf16.mxu0 0
        %1528 = vmatmul.mubr.bf16.gmra.mxu0 %v529
        %v1529 = vpop.f32.mrf.mxu0
        %v1530 = vadd.f32 0.0, %v1529
        %v1531 = vpop.f32.mrf.mxu0
        %v1532 = vadd.f32 0.0, %v1531
        %v1533 = vpop.f32.mrf.mxu0
        %v1534 = vadd.f32 0.0, %v1533
        %v1535 = vpop.f32.mrf.mxu0
        %v1536 = vadd.f32 0.0, %v1535
        %1537 = vmatprep.mubr.bf16.mxu0 0
        %1538 = vmatmul.mubr.bf16.gmra.mxu0 %v532
        %v1539 = vpop.f32.mrf.mxu0
        %v1540 = vadd.f32 0.0, %v1539
        %v1541 = vpop.f32.mrf.mxu0
        %v1542 = vadd.f32 0.0, %v1541
        %v1543 = vpop.f32.mrf.mxu0
        %v1544 = vadd.f32 0.0, %v1543
        %v1545 = vpop.f32.mrf.mxu0
        %v1546 = vadd.f32 0.0, %v1545
        %1547 = vmatprep.mubr.bf16.mxu0 0
        %1548 = vmatmul.mubr.bf16.gmra.mxu0 %v535
        %v1549 = vpop.f32.mrf.mxu0
        %v1550 = vadd.f32 0.0, %v1549
        %v1551 = vpop.f32.mrf.mxu0
        %v1552 = vadd.f32 0.0, %v1551
        %v1553 = vpop.f32.mrf.mxu0
        %v1554 = vadd.f32 0.0, %v1553
        %v1555 = vpop.f32.mrf.mxu0
        %v1556 = vadd.f32 0.0, %v1555
        %1557 = vmatprep.mubr.bf16.mxu0 0
        %1558 = vmatmul.mubr.bf16.gmra.mxu0 %v538
        %v1559 = vpop.f32.mrf.mxu0
        %v1560 = vadd.f32 0.0, %v1559
        %v1561 = vpop.f32.mrf.mxu0
        %v1562 = vadd.f32 0.0, %v1561
        %v1563 = vpop.f32.mrf.mxu0
        %v1564 = vadd.f32 0.0, %v1563
        %v1565 = vpop.f32.mrf.mxu0
        %v1566 = vadd.f32 0.0, %v1565
        %1567 = vmatprep.mubr.bf16.mxu0 0
        %1568 = vmatmul.mubr.bf16.gmra.mxu0 %v541
        %v1569 = vpop.f32.mrf.mxu0
        %v1570 = vadd.f32 0.0, %v1569
        %v1571 = vpop.f32.mrf.mxu0
        %v1572 = vadd.f32 0.0, %v1571
        %v1573 = vpop.f32.mrf.mxu0
        %v1574 = vadd.f32 0.0, %v1573
        %v1575 = vpop.f32.mrf.mxu0
        %v1576 = vadd.f32 0.0, %v1575
        %1577 = vmatprep.mubr.bf16.mxu0 0
        %1578 = vmatmul.mubr.bf16.gmra.mxu0 %v544
        %v1579 = vpop.f32.mrf.mxu0
        %v1580 = vadd.f32 0.0, %v1579
        %v1581 = vpop.f32.mrf.mxu0
        %v1582 = vadd.f32 0.0, %v1581
        %v1583 = vpop.f32.mrf.mxu0
        %v1584 = vadd.f32 0.0, %v1583
        %v1585 = vpop.f32.mrf.mxu0
        %v1586 = vadd.f32 0.0, %v1585
        %1587 = vmatprep.mubr.bf16.mxu0 0
        %1588 = vmatmul.mubr.bf16.gmra.mxu0 %v547
        %v1589 = vpop.f32.mrf.mxu0
        %v1590 = vadd.f32 0.0, %v1589
        %v1591 = vpop.f32.mrf.mxu0
        %v1592 = vadd.f32 0.0, %v1591
        %v1593 = vpop.f32.mrf.mxu0
        %v1594 = vadd.f32 0.0, %v1593
        %v1595 = vpop.f32.mrf.mxu0
        %v1596 = vadd.f32 0.0, %v1595
        %1597 = vmatprep.mubr.bf16.mxu0 0
        %1598 = vmatmul.mubr.bf16.gmra.mxu0 %v550
        %v1599 = vpop.f32.mrf.mxu0
        %v1600 = vadd.f32 0.0, %v1599
        %v1601 = vpop.f32.mrf.mxu0
        %v1602 = vadd.f32 0.0, %v1601
        %v1603 = vpop.f32.mrf.mxu0
        %v1604 = vadd.f32 0.0, %v1603
        %v1605 = vpop.f32.mrf.mxu0
        %v1606 = vadd.f32 0.0, %v1605
        %1607 = vmatprep.mubr.bf16.mxu0 0
        %1608 = vmatmul.mubr.bf16.gmra.mxu0 %v553
        %v1609 = vpop.f32.mrf.mxu0
        %v1610 = vadd.f32 0.0, %v1609
        %v1611 = vpop.f32.mrf.mxu0
        %v1612 = vadd.f32 0.0, %v1611
        %v1613 = vpop.f32.mrf.mxu0
        %v1614 = vadd.f32 0.0, %v1613
        %v1615 = vpop.f32.mrf.mxu0
        %v1616 = vadd.f32 0.0, %v1615
        %1617 = vmatprep.mubr.bf16.mxu0 0
        %1618 = vmatmul.mubr.bf16.gmra.mxu0 %v556
        %v1619 = vpop.f32.mrf.mxu0
        %v1620 = vadd.f32 0.0, %v1619
        %v1621 = vpop.f32.mrf.mxu0
        %v1622 = vadd.f32 0.0, %v1621
        %v1623 = vpop.f32.mrf.mxu0
        %v1624 = vadd.f32 0.0, %v1623
        %v1625 = vpop.f32.mrf.mxu0
        %v1626 = vadd.f32 0.0, %v1625
        %1627 = vmatprep.mubr.bf16.mxu0 0
        %1628 = vmatmul.mubr.bf16.gmra.mxu0 %v559
        %v1629 = vpop.f32.mrf.mxu0
        %v1630 = vadd.f32 0.0, %v1629
        %v1631 = vpop.f32.mrf.mxu0
        %v1632 = vadd.f32 0.0, %v1631
        %v1633 = vpop.f32.mrf.mxu0
        %v1634 = vadd.f32 0.0, %v1633
        %v1635 = vpop.f32.mrf.mxu0
        %v1636 = vadd.f32 0.0, %v1635
        %1637 = vmatprep.mubr.bf16.mxu0 0
        %1638 = vmatmul.mubr.bf16.gmra.mxu0 %v562
        %v1639 = vpop.f32.mrf.mxu0
        %v1640 = vadd.f32 0.0, %v1639
        %v1641 = vpop.f32.mrf.mxu0
        %v1642 = vadd.f32 0.0, %v1641
        %v1643 = vpop.f32.mrf.mxu0
        %v1644 = vadd.f32 0.0, %v1643
        %v1645 = vpop.f32.mrf.mxu0
        %v1646 = vadd.f32 0.0, %v1645
        %1647 = vmatprep.mubr.bf16.mxu0 0
        %1648 = vmatmul.mubr.bf16.gmra.mxu0 %v565
        %v1649 = vpop.f32.mrf.mxu0
        %v1650 = vadd.f32 0.0, %v1649
        %v1651 = vpop.f32.mrf.mxu0
        %v1652 = vadd.f32 0.0, %v1651
        %v1653 = vpop.f32.mrf.mxu0
        %v1654 = vadd.f32 0.0, %v1653
        %v1655 = vpop.f32.mrf.mxu0
        %v1656 = vadd.f32 0.0, %v1655
        %1657 = vmatprep.mubr.bf16.mxu0 0
        %1658 = vmatmul.mubr.bf16.gmra.mxu0 %v568
        %v1659 = vpop.f32.mrf.mxu0
        %v1660 = vadd.f32 0.0, %v1659
        %v1661 = vpop.f32.mrf.mxu0
        %v1662 = vadd.f32 0.0, %v1661
        %v1663 = vpop.f32.mrf.mxu0
        %v1664 = vadd.f32 0.0, %v1663
        %v1665 = vpop.f32.mrf.mxu0
        %v1666 = vadd.f32 0.0, %v1665
        %1667 = vmatprep.mubr.bf16.mxu0 0
        %1668 = vmatmul.mubr.bf16.gmra.mxu0 %v571
        %v1669 = vpop.f32.mrf.mxu0
        %v1670 = vadd.f32 0.0, %v1669
        %v1671 = vpop.f32.mrf.mxu0
        %v1672 = vadd.f32 0.0, %v1671
        %v1673 = vpop.f32.mrf.mxu0
        %v1674 = vadd.f32 0.0, %v1673
        %v1675 = vpop.f32.mrf.mxu0
        %v1676 = vadd.f32 0.0, %v1675
        %1677 = vmatprep.mubr.bf16.mxu0 0
        %1678 = vmatmul.mubr.bf16.gmra.mxu0 %v574
        %v1679 = vpop.f32.mrf.mxu0
        %v1680 = vadd.f32 0.0, %v1679
        %v1681 = vpop.f32.mrf.mxu0
        %v1682 = vadd.f32 0.0, %v1681
        %v1683 = vpop.f32.mrf.mxu0
        %v1684 = vadd.f32 0.0, %v1683
        %v1685 = vpop.f32.mrf.mxu0
        %v1686 = vadd.f32 0.0, %v1685
        %1687 = vmatprep.mubr.bf16.mxu0 0
        %1688 = vmatmul.mubr.bf16.gmra.mxu0 %v577
        %v1689 = vpop.f32.mrf.mxu0
        %v1690 = vadd.f32 0.0, %v1689
        %v1691 = vpop.f32.mrf.mxu0
        %v1692 = vadd.f32 0.0, %v1691
        %v1693 = vpop.f32.mrf.mxu0
        %v1694 = vadd.f32 0.0, %v1693
        %v1695 = vpop.f32.mrf.mxu0
        %v1696 = vadd.f32 0.0, %v1695
        %1697 = vmatprep.mubr.bf16.mxu0 0
        %1698 = vmatmul.mubr.bf16.gmra.mxu0 %v580
        %v1699 = vpop.f32.mrf.mxu0
        %v1700 = vadd.f32 0.0, %v1699
        %v1701 = vpop.f32.mrf.mxu0
        %v1702 = vadd.f32 0.0, %v1701
        %v1703 = vpop.f32.mrf.mxu0
        %v1704 = vadd.f32 0.0, %v1703
        %v1705 = vpop.f32.mrf.mxu0
        %v1706 = vadd.f32 0.0, %v1705
        %1707 = vmatprep.mubr.bf16.mxu0 0
        %1708 = vmatmul.mubr.bf16.gmra.mxu0 %v583
        %v1709 = vpop.f32.mrf.mxu0
        %v1710 = vadd.f32 0.0, %v1709
        %v1711 = vpop.f32.mrf.mxu0
        %v1712 = vadd.f32 0.0, %v1711
        %v1713 = vpop.f32.mrf.mxu0
        %v1714 = vadd.f32 0.0, %v1713
        %v1715 = vpop.f32.mrf.mxu0
        %v1716 = vadd.f32 0.0, %v1715
        %1717 = vmatprep.mubr.bf16.mxu0 0
        %1718 = vmatmul.mubr.bf16.gmra.mxu0 %v586
        %v1719 = vpop.f32.mrf.mxu0
        %v1720 = vadd.f32 0.0, %v1719
        %v1721 = vpop.f32.mrf.mxu0
        %v1722 = vadd.f32 0.0, %v1721
        %v1723 = vpop.f32.mrf.mxu0
        %v1724 = vadd.f32 0.0, %v1723
        %v1725 = vpop.f32.mrf.mxu0
        %v1726 = vadd.f32 0.0, %v1725
        %1727 = vdwg.mxu0
        %1728 = vmatprep.subr.bf16.mxu0 0
        %1729 = vmatpush1.bf16.msra.mxu0 0
        %1730 = vmatprep.subr.bf16.mxu0 0
        %1731 = vmatpush1.bf16.msra.mxu0 0
        %1732 = vmatprep.subr.bf16.mxu0 0
        %1733 = vmatpush1.bf16.msra.mxu0 0
        %1734 = vmatprep.subr.bf16.mxu0 0
        %1735 = vmatpush1.bf16.msra.mxu0 0
        %1736 = vmatprep.subr.bf16.mxu0 0
        %1737 = vmatpush1.bf16.msra.mxu0 0
        %1738 = vmatprep.subr.bf16.mxu0 0
        %1739 = vmatpush1.bf16.msra.mxu0 0
        %1740 = vmatprep.subr.bf16.mxu0 0
        %1741 = vmatpush1.bf16.msra.mxu0 0
        %1742 = vmatprep.subr.bf16.mxu0 0
        %1743 = vmatpush1.bf16.msra.mxu0 %v384
        %1744 = vmatprep.subr.bf16.mxu0 0
        %1745 = vmatpush2.bf16.msra.mxu0 0
        %1746 = vmatprep.subr.bf16.mxu0 0
        %1747 = vmatpush2.bf16.msra.mxu0 0
        %1748 = vmatprep.subr.bf16.mxu0 0
        %1749 = vmatpush2.bf16.msra.mxu0 0
        %1750 = vmatprep.subr.bf16.mxu0 0
        %1751 = vmatpush2.bf16.msra.mxu0 0
        %1752 = vmatprep.subr.bf16.mxu0 0
        %1753 = vmatpush2.bf16.msra.mxu0 0
        %1754 = vmatprep.subr.bf16.mxu0 0
        %1755 = vmatpush2.bf16.msra.mxu0 0
        %1756 = vmatprep.subr.bf16.mxu0 0
        %1757 = vmatpush2.bf16.msra.mxu0 0
        %1758 = vmatprep.subr.bf16.mxu0 0
        %1759 = vmatpush2.bf16.msra.mxu0 0
        %1760 = vmatprep.mubr.bf16.mxu0 0
        %1761 = vmatmul.mubr.bf16.gmra.mxu0 %v529
        %v1762 = vpop.f32.mrf.mxu0
        %v1763 = vadd.f32 0.0, %v1762
        %v1764 = vpop.f32.mrf.mxu0
        %v1765 = vpop.f32.mrf.mxu0
        %v1766 = vadd.f32 0.0, %v1765
        %v1767 = vpop.f32.mrf.mxu0
        %1768 = vmatprep.mubr.bf16.mxu0 0
        %1769 = vmatmul.mubr.bf16.gmra.mxu0 %v532
        %v1770 = vpop.f32.mrf.mxu0
        %v1771 = vadd.f32 0.0, %v1770
        %v1772 = vpop.f32.mrf.mxu0
        %v1773 = vpop.f32.mrf.mxu0
        %v1774 = vadd.f32 0.0, %v1773
        %v1775 = vpop.f32.mrf.mxu0
        %1776 = vmatprep.mubr.bf16.mxu0 0
        %1777 = vmatmul.mubr.bf16.gmra.mxu0 %v535
        %v1778 = vpop.f32.mrf.mxu0
        %v1779 = vadd.f32 0.0, %v1778
        %v1780 = vpop.f32.mrf.mxu0
        %v1781 = vpop.f32.mrf.mxu0
        %v1782 = vadd.f32 0.0, %v1781
        %v1783 = vpop.f32.mrf.mxu0
        %1784 = vmatprep.mubr.bf16.mxu0 0
        %1785 = vmatmul.mubr.bf16.gmra.mxu0 %v538
        %v1786 = vpop.f32.mrf.mxu0
        %v1787 = vadd.f32 0.0, %v1786
        %v1788 = vpop.f32.mrf.mxu0
        %v1789 = vpop.f32.mrf.mxu0
        %v1790 = vadd.f32 0.0, %v1789
        %v1791 = vpop.f32.mrf.mxu0
        %1792 = vmatprep.mubr.bf16.mxu0 0
        %1793 = vmatmul.mubr.bf16.gmra.mxu0 %v541
        %v1794 = vpop.f32.mrf.mxu0
        %v1795 = vadd.f32 0.0, %v1794
        %v1796 = vpop.f32.mrf.mxu0
        %v1797 = vpop.f32.mrf.mxu0
        %v1798 = vadd.f32 0.0, %v1797
        %v1799 = vpop.f32.mrf.mxu0
        %1800 = vmatprep.mubr.bf16.mxu0 0
        %1801 = vmatmul.mubr.bf16.gmra.mxu0 %v544
        %v1802 = vpop.f32.mrf.mxu0
        %v1803 = vadd.f32 0.0, %v1802
        %v1804 = vpop.f32.mrf.mxu0
        %v1805 = vpop.f32.mrf.mxu0
        %v1806 = vadd.f32 0.0, %v1805
        %v1807 = vpop.f32.mrf.mxu0
        %1808 = vmatprep.mubr.bf16.mxu0 0
        %1809 = vmatmul.mubr.bf16.gmra.mxu0 %v547
        %v1810 = vpop.f32.mrf.mxu0
        %v1811 = vadd.f32 0.0, %v1810
        %v1812 = vpop.f32.mrf.mxu0
        %v1813 = vpop.f32.mrf.mxu0
        %v1814 = vadd.f32 0.0, %v1813
        %v1815 = vpop.f32.mrf.mxu0
        %1816 = vmatprep.mubr.bf16.mxu0 0
        %1817 = vmatmul.mubr.bf16.gmra.mxu0 %v550
        %v1818 = vpop.f32.mrf.mxu0
        %v1819 = vadd.f32 0.0, %v1818
        %v1820 = vpop.f32.mrf.mxu0
        %v1821 = vpop.f32.mrf.mxu0
        %v1822 = vadd.f32 0.0, %v1821
        %v1823 = vpop.f32.mrf.mxu0
        %1824 = vmatprep.mubr.bf16.mxu0 0
        %1825 = vmatmul.mubr.bf16.gmra.mxu0 %v553
        %v1826 = vpop.f32.mrf.mxu0
        %v1827 = vadd.f32 0.0, %v1826
        %v1828 = vpop.f32.mrf.mxu0
        %v1829 = vpop.f32.mrf.mxu0
        %v1830 = vadd.f32 0.0, %v1829
        %v1831 = vpop.f32.mrf.mxu0
        %1832 = vmatprep.mubr.bf16.mxu0 0
        %1833 = vmatmul.mubr.bf16.gmra.mxu0 %v556
        %v1834 = vpop.f32.mrf.mxu0
        %v1835 = vadd.f32 0.0, %v1834
        %v1836 = vpop.f32.mrf.mxu0
        %v1837 = vpop.f32.mrf.mxu0
        %v1838 = vadd.f32 0.0, %v1837
        %v1839 = vpop.f32.mrf.mxu0
        %1840 = vmatprep.mubr.bf16.mxu0 0
        %1841 = vmatmul.mubr.bf16.gmra.mxu0 %v559
        %v1842 = vpop.f32.mrf.mxu0
        %v1843 = vadd.f32 0.0, %v1842
        %v1844 = vpop.f32.mrf.mxu0
        %v1845 = vpop.f32.mrf.mxu0
        %v1846 = vadd.f32 0.0, %v1845
        %v1847 = vpop.f32.mrf.mxu0
        %1848 = vmatprep.mubr.bf16.mxu0 0
        %1849 = vmatmul.mubr.bf16.gmra.mxu0 %v562
        %v1850 = vpop.f32.mrf.mxu0
        %v1851 = vadd.f32 0.0, %v1850
        %v1852 = vpop.f32.mrf.mxu0
        %v1853 = vpop.f32.mrf.mxu0
        %v1854 = vadd.f32 0.0, %v1853
        %v1855 = vpop.f32.mrf.mxu0
        %1856 = vmatprep.mubr.bf16.mxu0 0
        %1857 = vmatmul.mubr.bf16.gmra.mxu0 %v565
        %v1858 = vpop.f32.mrf.mxu0
        %v1859 = vadd.f32 0.0, %v1858
        %v1860 = vpop.f32.mrf.mxu0
        %v1861 = vpop.f32.mrf.mxu0
        %v1862 = vadd.f32 0.0, %v1861
        %v1863 = vpop.f32.mrf.mxu0
        %1864 = vmatprep.mubr.bf16.mxu0 0
        %1865 = vmatmul.mubr.bf16.gmra.mxu0 %v568
        %v1866 = vpop.f32.mrf.mxu0
        %v1867 = vadd.f32 0.0, %v1866
        %v1868 = vpop.f32.mrf.mxu0
        %v1869 = vpop.f32.mrf.mxu0
        %v1870 = vadd.f32 0.0, %v1869
        %v1871 = vpop.f32.mrf.mxu0
        %1872 = vmatprep.mubr.bf16.mxu0 0
        %1873 = vmatmul.mubr.bf16.gmra.mxu0 %v571
        %v1874 = vpop.f32.mrf.mxu0
        %v1875 = vadd.f32 0.0, %v1874
        %v1876 = vpop.f32.mrf.mxu0
        %v1877 = vpop.f32.mrf.mxu0
        %v1878 = vadd.f32 0.0, %v1877
        %v1879 = vpop.f32.mrf.mxu0
        %1880 = vmatprep.mubr.bf16.mxu0 0
        %1881 = vmatmul.mubr.bf16.gmra.mxu0 %v574
        %v1882 = vpop.f32.mrf.mxu0
        %v1883 = vadd.f32 0.0, %v1882
        %v1884 = vpop.f32.mrf.mxu0
        %v1885 = vpop.f32.mrf.mxu0
        %v1886 = vadd.f32 0.0, %v1885
        %v1887 = vpop.f32.mrf.mxu0
        %1888 = vmatprep.mubr.bf16.mxu0 0
        %1889 = vmatmul.mubr.bf16.gmra.mxu0 %v577
        %v1890 = vpop.f32.mrf.mxu0
        %v1891 = vadd.f32 0.0, %v1890
        %v1892 = vpop.f32.mrf.mxu0
        %v1893 = vpop.f32.mrf.mxu0
        %v1894 = vadd.f32 0.0, %v1893
        %v1895 = vpop.f32.mrf.mxu0
        %1896 = vmatprep.mubr.bf16.mxu0 0
        %1897 = vmatmul.mubr.bf16.gmra.mxu0 %v580
        %v1898 = vpop.f32.mrf.mxu0
        %v1899 = vadd.f32 0.0, %v1898
        %v1900 = vpop.f32.mrf.mxu0
        %v1901 = vpop.f32.mrf.mxu0
        %v1902 = vadd.f32 0.0, %v1901
        %v1903 = vpop.f32.mrf.mxu0
        %1904 = vmatprep.mubr.bf16.mxu0 0
        %1905 = vmatmul.mubr.bf16.gmra.mxu0 %v583
        %v1906 = vpop.f32.mrf.mxu0
        %v1907 = vadd.f32 0.0, %v1906
        %v1908 = vpop.f32.mrf.mxu0
        %v1909 = vpop.f32.mrf.mxu0
        %v1910 = vadd.f32 0.0, %v1909
        %v1911 = vpop.f32.mrf.mxu0
        %1912 = vmatprep.mubr.bf16.mxu0 0
        %1913 = vmatmul.mubr.bf16.gmra.mxu0 %v586
        %v1914 = vpop.f32.mrf.mxu0
        %v1915 = vadd.f32 0.0, %v1914
        %v1916 = vpop.f32.mrf.mxu0
        %v1917 = vpop.f32.mrf.mxu0
        %v1918 = vadd.f32 0.0, %v1917
        %v1919 = vpop.f32.mrf.mxu0
        %1920 = vdwg.mxu0
        %v1921 = vpack.c.bf16 %v1534, %v1530
        %v1922 = vpack.c.bf16 %v1536, %v1532
        %v1923 = vpack.c.bf16 %v1766, %v1763
        %v1924 = vpack.c.bf16 %v1544, %v1540
        %v1925 = vpack.c.bf16 %v1546, %v1542
        %v1926 = vpack.c.bf16 %v1774, %v1771
        %v1927 = vpack.c.bf16 %v1554, %v1550
        %v1928 = vpack.c.bf16 %v1556, %v1552
        %v1929 = vpack.c.bf16 %v1782, %v1779
        %v1930 = vpack.c.bf16 %v1564, %v1560
        %v1931 = vpack.c.bf16 %v1566, %v1562
        %v1932 = vpack.c.bf16 %v1790, %v1787
        %v1933 = vpack.c.bf16 %v1574, %v1570
        %v1934 = vpack.c.bf16 %v1576, %v1572
        %v1935 = vpack.c.bf16 %v1798, %v1795
        %v1936 = vpack.c.bf16 %v1584, %v1580
        %v1937 = vpack.c.bf16 %v1586, %v1582
        %v1938 = vpack.c.bf16 %v1806, %v1803
        %v1939 = vpack.c.bf16 %v1594, %v1590
        %v1940 = vpack.c.bf16 %v1596, %v1592
        %v1941 = vpack.c.bf16 %v1814, %v1811
        %v1942 = vpack.c.bf16 %v1604, %v1600
        %v1943 = vpack.c.bf16 %v1606, %v1602
        %v1944 = vpack.c.bf16 %v1822, %v1819
        %v1945 = vpack.c.bf16 %v1614, %v1610
        %v1946 = vpack.c.bf16 %v1616, %v1612
        %v1947 = vpack.c.bf16 %v1830, %v1827
        %v1948 = vpack.c.bf16 %v1624, %v1620
        %v1949 = vpack.c.bf16 %v1626, %v1622
        %v1950 = vpack.c.bf16 %v1838, %v1835
        %v1951 = vpack.c.bf16 %v1634, %v1630
        %v1952 = vpack.c.bf16 %v1636, %v1632
        %v1953 = vpack.c.bf16 %v1846, %v1843
        %v1954 = vpack.c.bf16 %v1644, %v1640
        %v1955 = vpack.c.bf16 %v1646, %v1642
        %v1956 = vpack.c.bf16 %v1854, %v1851
        %v1957 = vpack.c.bf16 %v1654, %v1650
        %v1958 = vpack.c.bf16 %v1656, %v1652
        %v1959 = vpack.c.bf16 %v1862, %v1859
        %v1960 = vpack.c.bf16 %v1664, %v1660
        %v1961 = vpack.c.bf16 %v1666, %v1662
        %v1962 = vpack.c.bf16 %v1870, %v1867
        %v1963 = vpack.c.bf16 %v1674, %v1670
        %v1964 = vpack.c.bf16 %v1676, %v1672
        %v1965 = vpack.c.bf16 %v1878, %v1875
        %v1966 = vpack.c.bf16 %v1684, %v1680
        %v1967 = vpack.c.bf16 %v1686, %v1682
        %v1968 = vpack.c.bf16 %v1886, %v1883
        %v1969 = vpack.c.bf16 %v1694, %v1690
        %v1970 = vpack.c.bf16 %v1696, %v1692
        %v1971 = vpack.c.bf16 %v1894, %v1891
        %v1972 = vpack.c.bf16 %v1704, %v1700
        %v1973 = vpack.c.bf16 %v1706, %v1702
        %v1974 = vpack.c.bf16 %v1902, %v1899
        %v1975 = vpack.c.bf16 %v1714, %v1710
        %v1976 = vpack.c.bf16 %v1716, %v1712
        %v1977 = vpack.c.bf16 %v1910, %v1907
        %v1978 = vpack.c.bf16 %v1724, %v1720
        %v1979 = vpack.c.bf16 %v1726, %v1722
        %v1980 = vpack.c.bf16 %v1918, %v1915
        %v2041 = vunpack.c.l.b16 %v1921
        %v2042 = vunpack.c.l.b16 %v1922
        %v2043 = vunpack.c.l.b16 %v1923
        %v2044 = vunpack.c.h.b16 %v1921
        %v2045 = vunpack.c.h.b16 %v1922
        %v2046 = vunpack.c.h.b16 %v1923
        %v2047 = vunpack.c.l.b16 %v1924
        %v2048 = vunpack.c.l.b16 %v1925
        %v2049 = vunpack.c.l.b16 %v1926
        %v2050 = vunpack.c.h.b16 %v1924
        %v2051 = vunpack.c.h.b16 %v1925
        %v2052 = vunpack.c.h.b16 %v1926
        %v2053 = vunpack.c.l.b16 %v1927
        %v2054 = vunpack.c.l.b16 %v1928
        %v2055 = vunpack.c.l.b16 %v1929
        %v2056 = vunpack.c.h.b16 %v1927
        %v2057 = vunpack.c.h.b16 %v1928
        %v2058 = vunpack.c.h.b16 %v1929
        %v2059 = vunpack.c.l.b16 %v1930
        %v2060 = vunpack.c.l.b16 %v1931
        %v2061 = vunpack.c.l.b16 %v1932
        %v2062 = vunpack.c.h.b16 %v1930
        %v2063 = vunpack.c.h.b16 %v1931
        %v2064 = vunpack.c.h.b16 %v1932
        %v2065 = vunpack.c.l.b16 %v1933
        %v2066 = vunpack.c.l.b16 %v1934
        %v2067 = vunpack.c.l.b16 %v1935
        %v2068 = vunpack.c.h.b16 %v1933
        %v2069 = vunpack.c.h.b16 %v1934
        %v2070 = vunpack.c.h.b16 %v1935
        %v2071 = vunpack.c.l.b16 %v1936
        %v2072 = vunpack.c.l.b16 %v1937
        %v2073 = vunpack.c.l.b16 %v1938
        %v2074 = vunpack.c.h.b16 %v1936
        %v2075 = vunpack.c.h.b16 %v1937
        %v2076 = vunpack.c.h.b16 %v1938
        %v2077 = vunpack.c.l.b16 %v1939
        %v2078 = vunpack.c.l.b16 %v1940
        %v2079 = vunpack.c.l.b16 %v1941
        %v2080 = vunpack.c.h.b16 %v1939
        %v2081 = vunpack.c.h.b16 %v1940
        %v2082 = vunpack.c.h.b16 %v1941
        %v2083 = vunpack.c.l.b16 %v1942
        %v2084 = vunpack.c.l.b16 %v1943
        %v2085 = vunpack.c.l.b16 %v1944
        %v2086 = vunpack.c.h.b16 %v1942
        %v2087 = vunpack.c.h.b16 %v1943
        %v2088 = vunpack.c.h.b16 %v1944
        %v2089 = vunpack.c.l.b16 %v1945
        %v2090 = vunpack.c.l.b16 %v1946
        %v2091 = vunpack.c.l.b16 %v1947
        %v2092 = vunpack.c.h.b16 %v1945
        %v2093 = vunpack.c.h.b16 %v1946
        %v2094 = vunpack.c.h.b16 %v1947
        %v2095 = vunpack.c.l.b16 %v1948
        %v2096 = vunpack.c.l.b16 %v1949
        %v2097 = vunpack.c.l.b16 %v1950
        %v2098 = vunpack.c.h.b16 %v1948
        %v2099 = vunpack.c.h.b16 %v1949
        %v2100 = vunpack.c.h.b16 %v1950
        %v2101 = vunpack.c.l.b16 %v1951
        %v2102 = vunpack.c.l.b16 %v1952
        %v2103 = vunpack.c.l.b16 %v1953
        %v2104 = vunpack.c.h.b16 %v1951
        %v2105 = vunpack.c.h.b16 %v1952
        %v2106 = vunpack.c.h.b16 %v1953
        %v2107 = vunpack.c.l.b16 %v1954
        %v2108 = vunpack.c.l.b16 %v1955
        %v2109 = vunpack.c.l.b16 %v1956
        %v2110 = vunpack.c.h.b16 %v1954
        %v2111 = vunpack.c.h.b16 %v1955
        %v2112 = vunpack.c.h.b16 %v1956
        %v2113 = vunpack.c.l.b16 %v1957
        %v2114 = vunpack.c.l.b16 %v1958
        %v2115 = vunpack.c.l.b16 %v1959
        %v2116 = vunpack.c.h.b16 %v1957
        %v2117 = vunpack.c.h.b16 %v1958
        %v2118 = vunpack.c.h.b16 %v1959
        %v2119 = vunpack.c.l.b16 %v1960
        %v2120 = vunpack.c.l.b16 %v1961
        %v2121 = vunpack.c.l.b16 %v1962
        %v2122 = vunpack.c.h.b16 %v1960
        %v2123 = vunpack.c.h.b16 %v1961
        %v2124 = vunpack.c.h.b16 %v1962
        %v2125 = vunpack.c.l.b16 %v1963
        %v2126 = vunpack.c.l.b16 %v1964
        %v2127 = vunpack.c.l.b16 %v1965
        %v2128 = vunpack.c.h.b16 %v1963
        %v2129 = vunpack.c.h.b16 %v1964
        %v2130 = vunpack.c.h.b16 %v1965
        %v2131 = vunpack.c.l.b16 %v1966
        %v2132 = vunpack.c.l.b16 %v1967
        %v2133 = vunpack.c.l.b16 %v1968
        %v2134 = vunpack.c.h.b16 %v1966
        %v2135 = vunpack.c.h.b16 %v1967
        %v2136 = vunpack.c.h.b16 %v1968
        %v2137 = vunpack.c.l.b16 %v1969
        %v2138 = vunpack.c.l.b16 %v1970
        %v2139 = vunpack.c.l.b16 %v1971
        %v2140 = vunpack.c.h.b16 %v1969
        %v2141 = vunpack.c.h.b16 %v1970
        %v2142 = vunpack.c.h.b16 %v1971
        %v2143 = vunpack.c.l.b16 %v1972
        %v2144 = vunpack.c.l.b16 %v1973
        %v2145 = vunpack.c.l.b16 %v1974
        %v2146 = vunpack.c.h.b16 %v1972
        %v2147 = vunpack.c.h.b16 %v1973
        %v2148 = vunpack.c.h.b16 %v1974
        %v2149 = vunpack.c.l.b16 %v1975
        %v2150 = vunpack.c.l.b16 %v1976
        %v2151 = vunpack.c.l.b16 %v1977
        %v2152 = vunpack.c.h.b16 %v1975
        %v2153 = vunpack.c.h.b16 %v1976
        %v2154 = vunpack.c.h.b16 %v1977
        %v2155 = vunpack.c.l.b16 %v1978
        %v2156 = vunpack.c.l.b16 %v1979
        %v2157 = vunpack.c.l.b16 %v1980
        %v2158 = vunpack.c.h.b16 %v1978
        %v2159 = vunpack.c.h.b16 %v1979
        %v2160 = vunpack.c.h.b16 %v1980
        %v2161 = vpack.c.b16 %v2042, %v2041
        %v2162 = vpack.c.b16 %v2043, %v2043
        %v2163 = vpack.c.b16 %v2045, %v2044
        %v2164 = vpack.c.b16 %v2046, %v2046
        %v2165 = vpack.c.b16 %v2048, %v2047
        %v2166 = vpack.c.b16 %v2049, %v2049
        %v2167 = vpack.c.b16 %v2051, %v2050
        %v2168 = vpack.c.b16 %v2052, %v2052
        %v2169 = vpack.c.b16 %v2054, %v2053
        %v2170 = vpack.c.b16 %v2055, %v2055
        %v2171 = vpack.c.b16 %v2057, %v2056
        %v2172 = vpack.c.b16 %v2058, %v2058
        %v2173 = vpack.c.b16 %v2060, %v2059
        %v2174 = vpack.c.b16 %v2061, %v2061
        %v2175 = vpack.c.b16 %v2063, %v2062
        %v2176 = vpack.c.b16 %v2064, %v2064
        %v2177 = vpack.c.b16 %v2066, %v2065
        %v2178 = vpack.c.b16 %v2067, %v2067
        %v2179 = vpack.c.b16 %v2069, %v2068
        %v2180 = vpack.c.b16 %v2070, %v2070
        %v2181 = vpack.c.b16 %v2072, %v2071
        %v2182 = vpack.c.b16 %v2073, %v2073
        %v2183 = vpack.c.b16 %v2075, %v2074
        %v2184 = vpack.c.b16 %v2076, %v2076
        %v2185 = vpack.c.b16 %v2078, %v2077
        %v2186 = vpack.c.b16 %v2079, %v2079
        %v2187 = vpack.c.b16 %v2081, %v2080
        %v2188 = vpack.c.b16 %v2082, %v2082
        %v2189 = vpack.c.b16 %v2084, %v2083
        %v2190 = vpack.c.b16 %v2085, %v2085
        %v2191 = vpack.c.b16 %v2087, %v2086
        %v2192 = vpack.c.b16 %v2088, %v2088
        %v2193 = vpack.c.b16 %v2090, %v2089
        %v2194 = vpack.c.b16 %v2091, %v2091
        %v2195 = vpack.c.b16 %v2093, %v2092
        %v2196 = vpack.c.b16 %v2094, %v2094
        %v2197 = vpack.c.b16 %v2096, %v2095
        %v2198 = vpack.c.b16 %v2097, %v2097
        %v2199 = vpack.c.b16 %v2099, %v2098
        %v2200 = vpack.c.b16 %v2100, %v2100
        %v2201 = vpack.c.b16 %v2102, %v2101
        %v2202 = vpack.c.b16 %v2103, %v2103
        %v2203 = vpack.c.b16 %v2105, %v2104
        %v2204 = vpack.c.b16 %v2106, %v2106
        %v2205 = vpack.c.b16 %v2108, %v2107
        %v2206 = vpack.c.b16 %v2109, %v2109
        %v2207 = vpack.c.b16 %v2111, %v2110
        %v2208 = vpack.c.b16 %v2112, %v2112
        %v2209 = vpack.c.b16 %v2114, %v2113
        %v2210 = vpack.c.b16 %v2115, %v2115
        %v2211 = vpack.c.b16 %v2117, %v2116
        %v2212 = vpack.c.b16 %v2118, %v2118
        %v2213 = vpack.c.b16 %v2120, %v2119
        %v2214 = vpack.c.b16 %v2121, %v2121
        %v2215 = vpack.c.b16 %v2123, %v2122
        %v2216 = vpack.c.b16 %v2124, %v2124
        %v2217 = vpack.c.b16 %v2126, %v2125
        %v2218 = vpack.c.b16 %v2127, %v2127
        %v2219 = vpack.c.b16 %v2129, %v2128
        %v2220 = vpack.c.b16 %v2130, %v2130
        %v2221 = vpack.c.b16 %v2132, %v2131
        %v2222 = vpack.c.b16 %v2133, %v2133
        %v2223 = vpack.c.b16 %v2135, %v2134
        %v2224 = vpack.c.b16 %v2136, %v2136
        %v2225 = vpack.c.b16 %v2138, %v2137
        %v2226 = vpack.c.b16 %v2139, %v2139
        %v2227 = vpack.c.b16 %v2141, %v2140
        %v2228 = vpack.c.b16 %v2142, %v2142
        %v2229 = vpack.c.b16 %v2144, %v2143
        %v2230 = vpack.c.b16 %v2145, %v2145
        %v2231 = vpack.c.b16 %v2147, %v2146
        %v2232 = vpack.c.b16 %v2148, %v2148
        %v2233 = vpack.c.b16 %v2150, %v2149
        %v2234 = vpack.c.b16 %v2151, %v2151
        %v2235 = vpack.c.b16 %v2153, %v2152
        %v2236 = vpack.c.b16 %v2154, %v2154
        %v2237 = vpack.c.b16 %v2156, %v2155
        %v2238 = vpack.c.b16 %v2157, %v2157
        %v2239 = vpack.c.b16 %v2159, %v2158
        %v2240 = vpack.c.b16 %v2160, %v2160
        %s2321 = scalar_lea.vmem %s204, 480 [#allocation7]
        %2322 = vst [vmem:[%s2321] sm:$0xff] %v2161
        %2323 = vst.msk [vmem:[%s2321 + $0x8] sm:$0xf] %vm1415, %v2162
        %2324 = vst [vmem:[%s2321 + $0xc] sm:$0xff] %v2163
        %2325 = vst.msk [vmem:[%s2321 + $0x14] sm:$0xf] %vm1415, %v2164
        %2326 = vst [vmem:[%s2321 + $0x18] sm:$0xff] %v2165
        %2327 = vst.msk [vmem:[%s2321 + $0x20] sm:$0xf] %vm1415, %v2166
        %2328 = vst [vmem:[%s2321 + $0x24] sm:$0xff] %v2167
        %2329 = vst.msk [vmem:[%s2321 + $0x2c] sm:$0xf] %vm1415, %v2168
        %2330 = vst [vmem:[%s2321 + $0x30] sm:$0xff] %v2169
        %2331 = vst.msk [vmem:[%s2321 + $0x38] sm:$0xf] %vm1415, %v2170
        %2332 = vst [vmem:[%s2321 + $0x3c] sm:$0xff] %v2171
        %2333 = vst.msk [vmem:[%s2321 + $0x44] sm:$0xf] %vm1415, %v2172
        %2334 = vst [vmem:[%s2321 + $0x48] sm:$0xff] %v2173
        %2335 = vst.msk [vmem:[%s2321 + $0x50] sm:$0xf] %vm1415, %v2174
        %2336 = vst [vmem:[%s2321 + $0x54] sm:$0xff] %v2175
        %2337 = vst.msk [vmem:[%s2321 + $0x5c] sm:$0xf] %vm1415, %v2176
        %2338 = vst [vmem:[%s2321 + $0x60] sm:$0xff] %v2177
        %2339 = vst.msk [vmem:[%s2321 + $0x68] sm:$0xf] %vm1415, %v2178
        %2340 = vst [vmem:[%s2321 + $0x6c] sm:$0xff] %v2179
        %2341 = vst.msk [vmem:[%s2321 + $0x74] sm:$0xf] %vm1415, %v2180
        %2342 = vst [vmem:[%s2321 + $0x78] sm:$0xff] %v2181
        %2343 = vst.msk [vmem:[%s2321 + $0x80] sm:$0xf] %vm1415, %v2182
        %2344 = vst [vmem:[%s2321 + $0x84] sm:$0xff] %v2183
        %2345 = vst.msk [vmem:[%s2321 + $0x8c] sm:$0xf] %vm1415, %v2184
        %2346 = vst [vmem:[%s2321 + $0x90] sm:$0xff] %v2185
        %2347 = vst.msk [vmem:[%s2321 + $0x98] sm:$0xf] %vm1415, %v2186
        %2348 = vst [vmem:[%s2321 + $0x9c] sm:$0xff] %v2187
        %2349 = vst.msk [vmem:[%s2321 + $0xa4] sm:$0xf] %vm1415, %v2188
        %2350 = vst [vmem:[%s2321 + $0xa8] sm:$0xff] %v2189
        %2351 = vst.msk [vmem:[%s2321 + $0xb0] sm:$0xf] %vm1415, %v2190
        %2352 = vst [vmem:[%s2321 + $0xb4] sm:$0xff] %v2191
        %2353 = vst.msk [vmem:[%s2321 + $0xbc] sm:$0xf] %vm1415, %v2192
        %2354 = vst [vmem:[%s2321 + $0xc0] sm:$0xff] %v2193
        %2355 = vst.msk [vmem:[%s2321 + $0xc8] sm:$0xf] %vm1415, %v2194
        %2356 = vst [vmem:[%s2321 + $0xcc] sm:$0xff] %v2195
        %2357 = vst.msk [vmem:[%s2321 + $0xd4] sm:$0xf] %vm1415, %v2196
        %2358 = vst [vmem:[%s2321 + $0xd8] sm:$0xff] %v2197
        %2359 = vst.msk [vmem:[%s2321 + $0xe0] sm:$0xf] %vm1415, %v2198
        %2360 = vst [vmem:[%s2321 + $0xe4] sm:$0xff] %v2199
        %2361 = vst.msk [vmem:[%s2321 + $0xec] sm:$0xf] %vm1415, %v2200
        %2362 = vst [vmem:[%s2321 + $0xf0] sm:$0xff] %v2201
        %2363 = vst.msk [vmem:[%s2321 + $0xf8] sm:$0xf] %vm1415, %v2202
        %2364 = vst [vmem:[%s2321 + $0xfc] sm:$0xff] %v2203
        %2365 = vst.msk [vmem:[%s2321 + $0x104] sm:$0xf] %vm1415, %v2204
        %2366 = vst [vmem:[%s2321 + $0x108] sm:$0xff] %v2205
        %2367 = vst.msk [vmem:[%s2321 + $0x110] sm:$0xf] %vm1415, %v2206
        %2368 = vst [vmem:[%s2321 + $0x114] sm:$0xff] %v2207
        %2369 = vst.msk [vmem:[%s2321 + $0x11c] sm:$0xf] %vm1415, %v2208
        %2370 = vst [vmem:[%s2321 + $0x120] sm:$0xff] %v2209
        %2371 = vst.msk [vmem:[%s2321 + $0x128] sm:$0xf] %vm1415, %v2210
        %2372 = vst [vmem:[%s2321 + $0x12c] sm:$0xff] %v2211
        %2373 = vst.msk [vmem:[%s2321 + $0x134] sm:$0xf] %vm1415, %v2212
        %2374 = vst [vmem:[%s2321 + $0x138] sm:$0xff] %v2213
        %2375 = vst.msk [vmem:[%s2321 + $0x140] sm:$0xf] %vm1415, %v2214
        %2376 = vst [vmem:[%s2321 + $0x144] sm:$0xff] %v2215
        %2377 = vst.msk [vmem:[%s2321 + $0x14c] sm:$0xf] %vm1415, %v2216
        %2378 = vst [vmem:[%s2321 + $0x150] sm:$0xff] %v2217
        %2379 = vst.msk [vmem:[%s2321 + $0x158] sm:$0xf] %vm1415, %v2218
        %2380 = vst [vmem:[%s2321 + $0x15c] sm:$0xff] %v2219
        %2381 = vst.msk [vmem:[%s2321 + $0x164] sm:$0xf] %vm1415, %v2220
        %2382 = vst [vmem:[%s2321 + $0x168] sm:$0xff] %v2221
        %2383 = vst.msk [vmem:[%s2321 + $0x170] sm:$0xf] %vm1415, %v2222
        %2384 = vst [vmem:[%s2321 + $0x174] sm:$0xff] %v2223
        %2385 = vst.msk [vmem:[%s2321 + $0x17c] sm:$0xf] %vm1415, %v2224
        %2386 = vst [vmem:[%s2321 + $0x180] sm:$0xff] %v2225
        %2387 = vst.msk [vmem:[%s2321 + $0x188] sm:$0xf] %vm1415, %v2226
        %2388 = vst [vmem:[%s2321 + $0x18c] sm:$0xff] %v2227
        %2389 = vst.msk [vmem:[%s2321 + $0x194] sm:$0xf] %vm1415, %v2228
        %2390 = vst [vmem:[%s2321 + $0x198] sm:$0xff] %v2229
        %2391 = vst.msk [vmem:[%s2321 + $0x1a0] sm:$0xf] %vm1415, %v2230
        %2392 = vst [vmem:[%s2321 + $0x1a4] sm:$0xff] %v2231
        %2393 = vst.msk [vmem:[%s2321 + $0x1ac] sm:$0xf] %vm1415, %v2232
        %2394 = vst [vmem:[%s2321 + $0x1b0] sm:$0xff] %v2233
        %2395 = vst.msk [vmem:[%s2321 + $0x1b8] sm:$0xf] %vm1415, %v2234
        %2396 = vst [vmem:[%s2321 + $0x1bc] sm:$0xff] %v2235
        %2397 = vst.msk [vmem:[%s2321 + $0x1c4] sm:$0xf] %vm1415, %v2236
        %2398 = vst [vmem:[%s2321 + $0x1c8] sm:$0xff] %v2237
        %2399 = vst.msk [vmem:[%s2321 + $0x1d0] sm:$0xf] %vm1415, %v2238
        %2400 = vst [vmem:[%s2321 + $0x1d4] sm:$0xff] %v2239
        %2401 = vst.msk [vmem:[%s2321 + $0x1dc] sm:$0xf] %vm1415, %v2240
        %2402 = vmatprep.subr.bf16.mxu0 0
        %2403 = vmatpush1.bf16.msra.mxu0 0
        %2404 = vmatprep.subr.bf16.mxu0 0
        %2405 = vmatpush1.bf16.msra.mxu0 0
        %2406 = vmatprep.subr.bf16.mxu0 0
        %2407 = vmatpush1.bf16.msra.mxu0 0
        %2408 = vmatprep.subr.bf16.mxu0 0
        %2409 = vmatpush1.bf16.msra.mxu0 0
        %2410 = vmatprep.subr.bf16.mxu0 0
        %2411 = vmatpush1.bf16.msra.mxu0 0
        %2412 = vmatprep.subr.bf16.mxu0 0
        %2413 = vmatpush1.bf16.msra.mxu0 0
        %2414 = vmatprep.subr.bf16.mxu0 0
        %2415 = vmatpush1.bf16.msra.mxu0 0
        %2416 = vmatprep.subr.bf16.mxu0 %v386
        %2417 = vmatpush1.bf16.msra.mxu0 %v385
        %2418 = vmatprep.subr.bf16.mxu0 0
        %2419 = vmatpush2.bf16.msra.mxu0 0
        %2420 = vmatprep.subr.bf16.mxu0 0
        %2421 = vmatpush2.bf16.msra.mxu0 0
        %2422 = vmatprep.subr.bf16.mxu0 0
        %2423 = vmatpush2.bf16.msra.mxu0 0
        %2424 = vmatprep.subr.bf16.mxu0 0
        %2425 = vmatpush2.bf16.msra.mxu0 0
        %2426 = vmatprep.subr.bf16.mxu0 0
        %2427 = vmatpush2.bf16.msra.mxu0 0
        %2428 = vmatprep.subr.bf16.mxu0 0
        %2429 = vmatpush2.bf16.msra.mxu0 0
        %2430 = vmatprep.subr.bf16.mxu0 0
        %2431 = vmatpush2.bf16.msra.mxu0 0
        %2432 = vmatprep.subr.bf16.mxu0 0
        %2433 = vmatpush2.bf16.msra.mxu0 0
        %2434 = vmatprep.mubr.bf16.mxu0 0
        %2435 = vmatmul.mubr.bf16.gmra.mxu0 %v529
        %v2436 = vpop.f32.mrf.mxu0
        %v2437 = vadd.f32 0.0, %v2436
        %v2438 = vpop.f32.mrf.mxu0
        %v2439 = vadd.f32 0.0, %v2438
        %v2440 = vpop.f32.mrf.mxu0
        %v2441 = vadd.f32 0.0, %v2440
        %v2442 = vpop.f32.mrf.mxu0
        %v2443 = vadd.f32 0.0, %v2442
        %2444 = vmatprep.mubr.bf16.mxu0 0
        %2445 = vmatmul.mubr.bf16.gmra.mxu0 %v532
        %v2446 = vpop.f32.mrf.mxu0
        %v2447 = vadd.f32 0.0, %v2446
        %v2448 = vpop.f32.mrf.mxu0
        %v2449 = vadd.f32 0.0, %v2448
        %v2450 = vpop.f32.mrf.mxu0
        %v2451 = vadd.f32 0.0, %v2450
        %v2452 = vpop.f32.mrf.mxu0
        %v2453 = vadd.f32 0.0, %v2452
        %2454 = vmatprep.mubr.bf16.mxu0 0
        %2455 = vmatmul.mubr.bf16.gmra.mxu0 %v535
        %v2456 = vpop.f32.mrf.mxu0
        %v2457 = vadd.f32 0.0, %v2456
        %v2458 = vpop.f32.mrf.mxu0
        %v2459 = vadd.f32 0.0, %v2458
        %v2460 = vpop.f32.mrf.mxu0
        %v2461 = vadd.f32 0.0, %v2460
        %v2462 = vpop.f32.mrf.mxu0
        %v2463 = vadd.f32 0.0, %v2462
        %2464 = vmatprep.mubr.bf16.mxu0 0
        %2465 = vmatmul.mubr.bf16.gmra.mxu0 %v538
        %v2466 = vpop.f32.mrf.mxu0
        %v2467 = vadd.f32 0.0, %v2466
        %v2468 = vpop.f32.mrf.mxu0
        %v2469 = vadd.f32 0.0, %v2468
        %v2470 = vpop.f32.mrf.mxu0
        %v2471 = vadd.f32 0.0, %v2470
        %v2472 = vpop.f32.mrf.mxu0
        %v2473 = vadd.f32 0.0, %v2472
        %2474 = vmatprep.mubr.bf16.mxu0 0
        %2475 = vmatmul.mubr.bf16.gmra.mxu0 %v541
        %v2476 = vpop.f32.mrf.mxu0
        %v2477 = vadd.f32 0.0, %v2476
        %v2478 = vpop.f32.mrf.mxu0
        %v2479 = vadd.f32 0.0, %v2478
        %v2480 = vpop.f32.mrf.mxu0
        %v2481 = vadd.f32 0.0, %v2480
        %v2482 = vpop.f32.mrf.mxu0
        %v2483 = vadd.f32 0.0, %v2482
        %2484 = vmatprep.mubr.bf16.mxu0 0
        %2485 = vmatmul.mubr.bf16.gmra.mxu0 %v544
        %v2486 = vpop.f32.mrf.mxu0
        %v2487 = vadd.f32 0.0, %v2486
        %v2488 = vpop.f32.mrf.mxu0
        %v2489 = vadd.f32 0.0, %v2488
        %v2490 = vpop.f32.mrf.mxu0
        %v2491 = vadd.f32 0.0, %v2490
        %v2492 = vpop.f32.mrf.mxu0
        %v2493 = vadd.f32 0.0, %v2492
        %2494 = vmatprep.mubr.bf16.mxu0 0
        %2495 = vmatmul.mubr.bf16.gmra.mxu0 %v547
        %v2496 = vpop.f32.mrf.mxu0
        %v2497 = vadd.f32 0.0, %v2496
        %v2498 = vpop.f32.mrf.mxu0
        %v2499 = vadd.f32 0.0, %v2498
        %v2500 = vpop.f32.mrf.mxu0
        %v2501 = vadd.f32 0.0, %v2500
        %v2502 = vpop.f32.mrf.mxu0
        %v2503 = vadd.f32 0.0, %v2502
        %2504 = vmatprep.mubr.bf16.mxu0 0
        %2505 = vmatmul.mubr.bf16.gmra.mxu0 %v550
        %v2506 = vpop.f32.mrf.mxu0
        %v2507 = vadd.f32 0.0, %v2506
        %v2508 = vpop.f32.mrf.mxu0
        %v2509 = vadd.f32 0.0, %v2508
        %v2510 = vpop.f32.mrf.mxu0
        %v2511 = vadd.f32 0.0, %v2510
        %v2512 = vpop.f32.mrf.mxu0
        %v2513 = vadd.f32 0.0, %v2512
        %2514 = vmatprep.mubr.bf16.mxu0 0
        %2515 = vmatmul.mubr.bf16.gmra.mxu0 %v553
        %v2516 = vpop.f32.mrf.mxu0
        %v2517 = vadd.f32 0.0, %v2516
        %v2518 = vpop.f32.mrf.mxu0
        %v2519 = vadd.f32 0.0, %v2518
        %v2520 = vpop.f32.mrf.mxu0
        %v2521 = vadd.f32 0.0, %v2520
        %v2522 = vpop.f32.mrf.mxu0
        %v2523 = vadd.f32 0.0, %v2522
        %2524 = vmatprep.mubr.bf16.mxu0 0
        %2525 = vmatmul.mubr.bf16.gmra.mxu0 %v556
        %v2526 = vpop.f32.mrf.mxu0
        %v2527 = vadd.f32 0.0, %v2526
        %v2528 = vpop.f32.mrf.mxu0
        %v2529 = vadd.f32 0.0, %v2528
        %v2530 = vpop.f32.mrf.mxu0
        %v2531 = vadd.f32 0.0, %v2530
        %v2532 = vpop.f32.mrf.mxu0
        %v2533 = vadd.f32 0.0, %v2532
        %2534 = vmatprep.mubr.bf16.mxu0 0
        %2535 = vmatmul.mubr.bf16.gmra.mxu0 %v559
        %v2536 = vpop.f32.mrf.mxu0
        %v2537 = vadd.f32 0.0, %v2536
        %v2538 = vpop.f32.mrf.mxu0
        %v2539 = vadd.f32 0.0, %v2538
        %v2540 = vpop.f32.mrf.mxu0
        %v2541 = vadd.f32 0.0, %v2540
        %v2542 = vpop.f32.mrf.mxu0
        %v2543 = vadd.f32 0.0, %v2542
        %2544 = vmatprep.mubr.bf16.mxu0 0
        %2545 = vmatmul.mubr.bf16.gmra.mxu0 %v562
        %v2546 = vpop.f32.mrf.mxu0
        %v2547 = vadd.f32 0.0, %v2546
        %v2548 = vpop.f32.mrf.mxu0
        %v2549 = vadd.f32 0.0, %v2548
        %v2550 = vpop.f32.mrf.mxu0
        %v2551 = vadd.f32 0.0, %v2550
        %v2552 = vpop.f32.mrf.mxu0
        %v2553 = vadd.f32 0.0, %v2552
        %2554 = vmatprep.mubr.bf16.mxu0 0
        %2555 = vmatmul.mubr.bf16.gmra.mxu0 %v565
        %v2556 = vpop.f32.mrf.mxu0
        %v2557 = vadd.f32 0.0, %v2556
        %v2558 = vpop.f32.mrf.mxu0
        %v2559 = vadd.f32 0.0, %v2558
        %v2560 = vpop.f32.mrf.mxu0
        %v2561 = vadd.f32 0.0, %v2560
        %v2562 = vpop.f32.mrf.mxu0
        %v2563 = vadd.f32 0.0, %v2562
        %2564 = vmatprep.mubr.bf16.mxu0 0
        %2565 = vmatmul.mubr.bf16.gmra.mxu0 %v568
        %v2566 = vpop.f32.mrf.mxu0
        %v2567 = vadd.f32 0.0, %v2566
        %v2568 = vpop.f32.mrf.mxu0
        %v2569 = vadd.f32 0.0, %v2568
        %v2570 = vpop.f32.mrf.mxu0
        %v2571 = vadd.f32 0.0, %v2570
        %v2572 = vpop.f32.mrf.mxu0
        %v2573 = vadd.f32 0.0, %v2572
        %2574 = vmatprep.mubr.bf16.mxu0 0
        %2575 = vmatmul.mubr.bf16.gmra.mxu0 %v571
        %v2576 = vpop.f32.mrf.mxu0
        %v2577 = vadd.f32 0.0, %v2576
        %v2578 = vpop.f32.mrf.mxu0
        %v2579 = vadd.f32 0.0, %v2578
        %v2580 = vpop.f32.mrf.mxu0
        %v2581 = vadd.f32 0.0, %v2580
        %v2582 = vpop.f32.mrf.mxu0
        %v2583 = vadd.f32 0.0, %v2582
        %2584 = vmatprep.mubr.bf16.mxu0 0
        %2585 = vmatmul.mubr.bf16.gmra.mxu0 %v574
        %v2586 = vpop.f32.mrf.mxu0
        %v2587 = vadd.f32 0.0, %v2586
        %v2588 = vpop.f32.mrf.mxu0
        %v2589 = vadd.f32 0.0, %v2588
        %v2590 = vpop.f32.mrf.mxu0
        %v2591 = vadd.f32 0.0, %v2590
        %v2592 = vpop.f32.mrf.mxu0
        %v2593 = vadd.f32 0.0, %v2592
        %2594 = vmatprep.mubr.bf16.mxu0 0
        %2595 = vmatmul.mubr.bf16.gmra.mxu0 %v577
        %v2596 = vpop.f32.mrf.mxu0
        %v2597 = vadd.f32 0.0, %v2596
        %v2598 = vpop.f32.mrf.mxu0
        %v2599 = vadd.f32 0.0, %v2598
        %v2600 = vpop.f32.mrf.mxu0
        %v2601 = vadd.f32 0.0, %v2600
        %v2602 = vpop.f32.mrf.mxu0
        %v2603 = vadd.f32 0.0, %v2602
        %2604 = vmatprep.mubr.bf16.mxu0 0
        %2605 = vmatmul.mubr.bf16.gmra.mxu0 %v580
        %v2606 = vpop.f32.mrf.mxu0
        %v2607 = vadd.f32 0.0, %v2606
        %v2608 = vpop.f32.mrf.mxu0
        %v2609 = vadd.f32 0.0, %v2608
        %v2610 = vpop.f32.mrf.mxu0
        %v2611 = vadd.f32 0.0, %v2610
        %v2612 = vpop.f32.mrf.mxu0
        %v2613 = vadd.f32 0.0, %v2612
        %2614 = vmatprep.mubr.bf16.mxu0 0
        %2615 = vmatmul.mubr.bf16.gmra.mxu0 %v583
        %v2616 = vpop.f32.mrf.mxu0
        %v2617 = vadd.f32 0.0, %v2616
        %v2618 = vpop.f32.mrf.mxu0
        %v2619 = vadd.f32 0.0, %v2618
        %v2620 = vpop.f32.mrf.mxu0
        %v2621 = vadd.f32 0.0, %v2620
        %v2622 = vpop.f32.mrf.mxu0
        %v2623 = vadd.f32 0.0, %v2622
        %2624 = vmatprep.mubr.bf16.mxu0 0
        %2625 = vmatmul.mubr.bf16.gmra.mxu0 %v586
        %v2626 = vpop.f32.mrf.mxu0
        %v2627 = vadd.f32 0.0, %v2626
        %v2628 = vpop.f32.mrf.mxu0
        %v2629 = vadd.f32 0.0, %v2628
        %v2630 = vpop.f32.mrf.mxu0
        %v2631 = vadd.f32 0.0, %v2630
        %v2632 = vpop.f32.mrf.mxu0
        %v2633 = vadd.f32 0.0, %v2632
        %2634 = vdwg.mxu0
        %2635 = vmatprep.subr.bf16.mxu0 0
        %2636 = vmatpush1.bf16.msra.mxu0 0
        %2637 = vmatprep.subr.bf16.mxu0 0
        %2638 = vmatpush1.bf16.msra.mxu0 0
        %2639 = vmatprep.subr.bf16.mxu0 0
        %2640 = vmatpush1.bf16.msra.mxu0 0
        %2641 = vmatprep.subr.bf16.mxu0 0
        %2642 = vmatpush1.bf16.msra.mxu0 0
        %2643 = vmatprep.subr.bf16.mxu0 0
        %2644 = vmatpush1.bf16.msra.mxu0 0
        %2645 = vmatprep.subr.bf16.mxu0 0
        %2646 = vmatpush1.bf16.msra.mxu0 0
        %2647 = vmatprep.subr.bf16.mxu0 0
        %2648 = vmatpush1.bf16.msra.mxu0 0
        %2649 = vmatprep.subr.bf16.mxu0 0
        %2650 = vmatpush1.bf16.msra.mxu0 %v387
        %2651 = vmatprep.subr.bf16.mxu0 0
        %2652 = vmatpush2.bf16.msra.mxu0 0
        %2653 = vmatprep.subr.bf16.mxu0 0
        %2654 = vmatpush2.bf16.msra.mxu0 0
        %2655 = vmatprep.subr.bf16.mxu0 0
        %2656 = vmatpush2.bf16.msra.mxu0 0
        %2657 = vmatprep.subr.bf16.mxu0 0
        %2658 = vmatpush2.bf16.msra.mxu0 0
        %2659 = vmatprep.subr.bf16.mxu0 0
        %2660 = vmatpush2.bf16.msra.mxu0 0
        %2661 = vmatprep.subr.bf16.mxu0 0
        %2662 = vmatpush2.bf16.msra.mxu0 0
        %2663 = vmatprep.subr.bf16.mxu0 0
        %2664 = vmatpush2.bf16.msra.mxu0 0
        %2665 = vmatprep.subr.bf16.mxu0 0
        %2666 = vmatpush2.bf16.msra.mxu0 0
        %2667 = vmatprep.mubr.bf16.mxu0 0
        %2668 = vmatmul.mubr.bf16.gmra.mxu0 %v529
        %v2669 = vpop.f32.mrf.mxu0
        %v2670 = vadd.f32 0.0, %v2669
        %v2671 = vpop.f32.mrf.mxu0
        %v2672 = vpop.f32.mrf.mxu0
        %v2673 = vadd.f32 0.0, %v2672
        %v2674 = vpop.f32.mrf.mxu0
        %2675 = vmatprep.mubr.bf16.mxu0 0
        %2676 = vmatmul.mubr.bf16.gmra.mxu0 %v532
        %v2677 = vpop.f32.mrf.mxu0
        %v2678 = vadd.f32 0.0, %v2677
        %v2679 = vpop.f32.mrf.mxu0
        %v2680 = vpop.f32.mrf.mxu0
        %v2681 = vadd.f32 0.0, %v2680
        %v2682 = vpop.f32.mrf.mxu0
        %2683 = vmatprep.mubr.bf16.mxu0 0
        %2684 = vmatmul.mubr.bf16.gmra.mxu0 %v535
        %v2685 = vpop.f32.mrf.mxu0
        %v2686 = vadd.f32 0.0, %v2685
        %v2687 = vpop.f32.mrf.mxu0
        %v2688 = vpop.f32.mrf.mxu0
        %v2689 = vadd.f32 0.0, %v2688
        %v2690 = vpop.f32.mrf.mxu0
        %2691 = vmatprep.mubr.bf16.mxu0 0
        %2692 = vmatmul.mubr.bf16.gmra.mxu0 %v538
        %v2693 = vpop.f32.mrf.mxu0
        %v2694 = vadd.f32 0.0, %v2693
        %v2695 = vpop.f32.mrf.mxu0
        %v2696 = vpop.f32.mrf.mxu0
        %v2697 = vadd.f32 0.0, %v2696
        %v2698 = vpop.f32.mrf.mxu0
        %2699 = vmatprep.mubr.bf16.mxu0 0
        %2700 = vmatmul.mubr.bf16.gmra.mxu0 %v541
        %v2701 = vpop.f32.mrf.mxu0
        %v2702 = vadd.f32 0.0, %v2701
        %v2703 = vpop.f32.mrf.mxu0
        %v2704 = vpop.f32.mrf.mxu0
        %v2705 = vadd.f32 0.0, %v2704
        %v2706 = vpop.f32.mrf.mxu0
        %2707 = vmatprep.mubr.bf16.mxu0 0
        %2708 = vmatmul.mubr.bf16.gmra.mxu0 %v544
        %v2709 = vpop.f32.mrf.mxu0
        %v2710 = vadd.f32 0.0, %v2709
        %v2711 = vpop.f32.mrf.mxu0
        %v2712 = vpop.f32.mrf.mxu0
        %v2713 = vadd.f32 0.0, %v2712
        %v2714 = vpop.f32.mrf.mxu0
        %2715 = vmatprep.mubr.bf16.mxu0 0
        %2716 = vmatmul.mubr.bf16.gmra.mxu0 %v547
        %v2717 = vpop.f32.mrf.mxu0
        %v2718 = vadd.f32 0.0, %v2717
        %v2719 = vpop.f32.mrf.mxu0
        %v2720 = vpop.f32.mrf.mxu0
        %v2721 = vadd.f32 0.0, %v2720
        %v2722 = vpop.f32.mrf.mxu0
        %2723 = vmatprep.mubr.bf16.mxu0 0
        %2724 = vmatmul.mubr.bf16.gmra.mxu0 %v550
        %v2725 = vpop.f32.mrf.mxu0
        %v2726 = vadd.f32 0.0, %v2725
        %v2727 = vpop.f32.mrf.mxu0
        %v2728 = vpop.f32.mrf.mxu0
        %v2729 = vadd.f32 0.0, %v2728
        %v2730 = vpop.f32.mrf.mxu0
        %2731 = vmatprep.mubr.bf16.mxu0 0
        %2732 = vmatmul.mubr.bf16.gmra.mxu0 %v553
        %v2733 = vpop.f32.mrf.mxu0
        %v2734 = vadd.f32 0.0, %v2733
        %v2735 = vpop.f32.mrf.mxu0
        %v2736 = vpop.f32.mrf.mxu0
        %v2737 = vadd.f32 0.0, %v2736
        %v2738 = vpop.f32.mrf.mxu0
        %2739 = vmatprep.mubr.bf16.mxu0 0
        %2740 = vmatmul.mubr.bf16.gmra.mxu0 %v556
        %v2741 = vpop.f32.mrf.mxu0
        %v2742 = vadd.f32 0.0, %v2741
        %v2743 = vpop.f32.mrf.mxu0
        %v2744 = vpop.f32.mrf.mxu0
        %v2745 = vadd.f32 0.0, %v2744
        %v2746 = vpop.f32.mrf.mxu0
        %2747 = vmatprep.mubr.bf16.mxu0 0
        %2748 = vmatmul.mubr.bf16.gmra.mxu0 %v559
        %v2749 = vpop.f32.mrf.mxu0
        %v2750 = vadd.f32 0.0, %v2749
        %v2751 = vpop.f32.mrf.mxu0
        %v2752 = vpop.f32.mrf.mxu0
        %v2753 = vadd.f32 0.0, %v2752
        %v2754 = vpop.f32.mrf.mxu0
        %2755 = vmatprep.mubr.bf16.mxu0 0
        %2756 = vmatmul.mubr.bf16.gmra.mxu0 %v562
        %v2757 = vpop.f32.mrf.mxu0
        %v2758 = vadd.f32 0.0, %v2757
        %v2759 = vpop.f32.mrf.mxu0
        %v2760 = vpop.f32.mrf.mxu0
        %v2761 = vadd.f32 0.0, %v2760
        %v2762 = vpop.f32.mrf.mxu0
        %2763 = vmatprep.mubr.bf16.mxu0 0
        %2764 = vmatmul.mubr.bf16.gmra.mxu0 %v565
        %v2765 = vpop.f32.mrf.mxu0
        %v2766 = vadd.f32 0.0, %v2765
        %v2767 = vpop.f32.mrf.mxu0
        %v2768 = vpop.f32.mrf.mxu0
        %v2769 = vadd.f32 0.0, %v2768
        %v2770 = vpop.f32.mrf.mxu0
        %2771 = vmatprep.mubr.bf16.mxu0 0
        %2772 = vmatmul.mubr.bf16.gmra.mxu0 %v568
        %v2773 = vpop.f32.mrf.mxu0
        %v2774 = vadd.f32 0.0, %v2773
        %v2775 = vpop.f32.mrf.mxu0
        %v2776 = vpop.f32.mrf.mxu0
        %v2777 = vadd.f32 0.0, %v2776
        %v2778 = vpop.f32.mrf.mxu0
        %2779 = vmatprep.mubr.bf16.mxu0 0
        %2780 = vmatmul.mubr.bf16.gmra.mxu0 %v571
        %v2781 = vpop.f32.mrf.mxu0
        %v2782 = vadd.f32 0.0, %v2781
        %v2783 = vpop.f32.mrf.mxu0
        %v2784 = vpop.f32.mrf.mxu0
        %v2785 = vadd.f32 0.0, %v2784
        %v2786 = vpop.f32.mrf.mxu0
        %2787 = vmatprep.mubr.bf16.mxu0 0
        %2788 = vmatmul.mubr.bf16.gmra.mxu0 %v574
        %v2789 = vpop.f32.mrf.mxu0
        %v2790 = vadd.f32 0.0, %v2789
        %v2791 = vpop.f32.mrf.mxu0
        %v2792 = vpop.f32.mrf.mxu0
        %v2793 = vadd.f32 0.0, %v2792
        %v2794 = vpop.f32.mrf.mxu0
        %2795 = vmatprep.mubr.bf16.mxu0 0
        %2796 = vmatmul.mubr.bf16.gmra.mxu0 %v577
        %v2797 = vpop.f32.mrf.mxu0
        %v2798 = vadd.f32 0.0, %v2797
        %v2799 = vpop.f32.mrf.mxu0
        %v2800 = vpop.f32.mrf.mxu0
        %v2801 = vadd.f32 0.0, %v2800
        %v2802 = vpop.f32.mrf.mxu0
        %2803 = vmatprep.mubr.bf16.mxu0 0
        %2804 = vmatmul.mubr.bf16.gmra.mxu0 %v580
        %v2805 = vpop.f32.mrf.mxu0
        %v2806 = vadd.f32 0.0, %v2805
        %v2807 = vpop.f32.mrf.mxu0
        %v2808 = vpop.f32.mrf.mxu0
        %v2809 = vadd.f32 0.0, %v2808
        %v2810 = vpop.f32.mrf.mxu0
        %2811 = vmatprep.mubr.bf16.mxu0 0
        %2812 = vmatmul.mubr.bf16.gmra.mxu0 %v583
        %v2813 = vpop.f32.mrf.mxu0
        %v2814 = vadd.f32 0.0, %v2813
        %v2815 = vpop.f32.mrf.mxu0
        %v2816 = vpop.f32.mrf.mxu0
        %v2817 = vadd.f32 0.0, %v2816
        %v2818 = vpop.f32.mrf.mxu0
        %2819 = vmatprep.mubr.bf16.mxu0 0
        %2820 = vmatmul.mubr.bf16.gmra.mxu0 %v586
        %v2821 = vpop.f32.mrf.mxu0
        %v2822 = vadd.f32 0.0, %v2821
        %v2823 = vpop.f32.mrf.mxu0
        %v2824 = vpop.f32.mrf.mxu0
        %v2825 = vadd.f32 0.0, %v2824
        %v2826 = vpop.f32.mrf.mxu0
        %2827 = vdwg.mxu0
        %v2828 = vpack.c.bf16 %v2441, %v2437
        %v2829 = vpack.c.bf16 %v2443, %v2439
        %v2830 = vpack.c.bf16 %v2673, %v2670
        %v2831 = vpack.c.bf16 %v2451, %v2447
        %v2832 = vpack.c.bf16 %v2453, %v2449
        %v2833 = vpack.c.bf16 %v2681, %v2678
        %v2834 = vpack.c.bf16 %v2461, %v2457
        %v2835 = vpack.c.bf16 %v2463, %v2459
        %v2836 = vpack.c.bf16 %v2689, %v2686
        %v2837 = vpack.c.bf16 %v2471, %v2467
        %v2838 = vpack.c.bf16 %v2473, %v2469
        %v2839 = vpack.c.bf16 %v2697, %v2694
        %v2840 = vpack.c.bf16 %v2481, %v2477
        %v2841 = vpack.c.bf16 %v2483, %v2479
        %v2842 = vpack.c.bf16 %v2705, %v2702
        %v2843 = vpack.c.bf16 %v2491, %v2487
        %v2844 = vpack.c.bf16 %v2493, %v2489
        %v2845 = vpack.c.bf16 %v2713, %v2710
        %v2846 = vpack.c.bf16 %v2501, %v2497
        %v2847 = vpack.c.bf16 %v2503, %v2499
        %v2848 = vpack.c.bf16 %v2721, %v2718
        %v2849 = vpack.c.bf16 %v2511, %v2507
        %v2850 = vpack.c.bf16 %v2513, %v2509
        %v2851 = vpack.c.bf16 %v2729, %v2726
        %v2852 = vpack.c.bf16 %v2521, %v2517
        %v2853 = vpack.c.bf16 %v2523, %v2519
        %v2854 = vpack.c.bf16 %v2737, %v2734
        %v2855 = vpack.c.bf16 %v2531, %v2527
        %v2856 = vpack.c.bf16 %v2533, %v2529
        %v2857 = vpack.c.bf16 %v2745, %v2742
        %v2858 = vpack.c.bf16 %v2541, %v2537
        %v2859 = vpack.c.bf16 %v2543, %v2539
        %v2860 = vpack.c.bf16 %v2753, %v2750
        %v2861 = vpack.c.bf16 %v2551, %v2547
        %v2862 = vpack.c.bf16 %v2553, %v2549
        %v2863 = vpack.c.bf16 %v2761, %v2758
        %v2864 = vpack.c.bf16 %v2561, %v2557
        %v2865 = vpack.c.bf16 %v2563, %v2559
        %v2866 = vpack.c.bf16 %v2769, %v2766
        %v2867 = vpack.c.bf16 %v2571, %v2567
        %v2868 = vpack.c.bf16 %v2573, %v2569
        %v2869 = vpack.c.bf16 %v2777, %v2774
        %v2870 = vpack.c.bf16 %v2581, %v2577
        %v2871 = vpack.c.bf16 %v2583, %v2579
        %v2872 = vpack.c.bf16 %v2785, %v2782
        %v2873 = vpack.c.bf16 %v2591, %v2587
        %v2874 = vpack.c.bf16 %v2593, %v2589
        %v2875 = vpack.c.bf16 %v2793, %v2790
        %v2876 = vpack.c.bf16 %v2601, %v2597
        %v2877 = vpack.c.bf16 %v2603, %v2599
        %v2878 = vpack.c.bf16 %v2801, %v2798
        %v2879 = vpack.c.bf16 %v2611, %v2607
        %v2880 = vpack.c.bf16 %v2613, %v2609
        %v2881 = vpack.c.bf16 %v2809, %v2806
        %v2882 = vpack.c.bf16 %v2621, %v2617
        %v2883 = vpack.c.bf16 %v2623, %v2619
        %v2884 = vpack.c.bf16 %v2817, %v2814
        %v2885 = vpack.c.bf16 %v2631, %v2627
        %v2886 = vpack.c.bf16 %v2633, %v2629
        %v2887 = vpack.c.bf16 %v2825, %v2822
        %v2948 = vunpack.c.l.b16 %v2828
        %v2949 = vunpack.c.l.b16 %v2829
        %v2950 = vunpack.c.l.b16 %v2830
        %v2951 = vunpack.c.h.b16 %v2828
        %v2952 = vunpack.c.h.b16 %v2829
        %v2953 = vunpack.c.h.b16 %v2830
        %v2954 = vunpack.c.l.b16 %v2831
        %v2955 = vunpack.c.l.b16 %v2832
        %v2956 = vunpack.c.l.b16 %v2833
        %v2957 = vunpack.c.h.b16 %v2831
        %v2958 = vunpack.c.h.b16 %v2832
        %v2959 = vunpack.c.h.b16 %v2833
        %v2960 = vunpack.c.l.b16 %v2834
        %v2961 = vunpack.c.l.b16 %v2835
        %v2962 = vunpack.c.l.b16 %v2836
        %v2963 = vunpack.c.h.b16 %v2834
        %v2964 = vunpack.c.h.b16 %v2835
        %v2965 = vunpack.c.h.b16 %v2836
        %v2966 = vunpack.c.l.b16 %v2837
        %v2967 = vunpack.c.l.b16 %v2838
        %v2968 = vunpack.c.l.b16 %v2839
        %v2969 = vunpack.c.h.b16 %v2837
        %v2970 = vunpack.c.h.b16 %v2838
        %v2971 = vunpack.c.h.b16 %v2839
        %v2972 = vunpack.c.l.b16 %v2840
        %v2973 = vunpack.c.l.b16 %v2841
        %v2974 = vunpack.c.l.b16 %v2842
        %v2975 = vunpack.c.h.b16 %v2840
        %v2976 = vunpack.c.h.b16 %v2841
        %v2977 = vunpack.c.h.b16 %v2842
        %v2978 = vunpack.c.l.b16 %v2843
        %v2979 = vunpack.c.l.b16 %v2844
        %v2980 = vunpack.c.l.b16 %v2845
        %v2981 = vunpack.c.h.b16 %v2843
        %v2982 = vunpack.c.h.b16 %v2844
        %v2983 = vunpack.c.h.b16 %v2845
        %v2984 = vunpack.c.l.b16 %v2846
        %v2985 = vunpack.c.l.b16 %v2847
        %v2986 = vunpack.c.l.b16 %v2848
        %v2987 = vunpack.c.h.b16 %v2846
        %v2988 = vunpack.c.h.b16 %v2847
        %v2989 = vunpack.c.h.b16 %v2848
        %v2990 = vunpack.c.l.b16 %v2849
        %v2991 = vunpack.c.l.b16 %v2850
        %v2992 = vunpack.c.l.b16 %v2851
        %v2993 = vunpack.c.h.b16 %v2849
        %v2994 = vunpack.c.h.b16 %v2850
        %v2995 = vunpack.c.h.b16 %v2851
        %v2996 = vunpack.c.l.b16 %v2852
        %v2997 = vunpack.c.l.b16 %v2853
        %v2998 = vunpack.c.l.b16 %v2854
        %v2999 = vunpack.c.h.b16 %v2852
        %v3000 = vunpack.c.h.b16 %v2853
        %v3001 = vunpack.c.h.b16 %v2854
        %v3002 = vunpack.c.l.b16 %v2855
        %v3003 = vunpack.c.l.b16 %v2856
        %v3004 = vunpack.c.l.b16 %v2857
        %v3005 = vunpack.c.h.b16 %v2855
        %v3006 = vunpack.c.h.b16 %v2856
        %v3007 = vunpack.c.h.b16 %v2857
        %v3008 = vunpack.c.l.b16 %v2858
        %v3009 = vunpack.c.l.b16 %v2859
        %v3010 = vunpack.c.l.b16 %v2860
        %v3011 = vunpack.c.h.b16 %v2858
        %v3012 = vunpack.c.h.b16 %v2859
        %v3013 = vunpack.c.h.b16 %v2860
        %v3014 = vunpack.c.l.b16 %v2861
        %v3015 = vunpack.c.l.b16 %v2862
        %v3016 = vunpack.c.l.b16 %v2863
        %v3017 = vunpack.c.h.b16 %v2861
        %v3018 = vunpack.c.h.b16 %v2862
        %v3019 = vunpack.c.h.b16 %v2863
        %v3020 = vunpack.c.l.b16 %v2864
        %v3021 = vunpack.c.l.b16 %v2865
        %v3022 = vunpack.c.l.b16 %v2866
        %v3023 = vunpack.c.h.b16 %v2864
        %v3024 = vunpack.c.h.b16 %v2865
        %v3025 = vunpack.c.h.b16 %v2866
        %v3026 = vunpack.c.l.b16 %v2867
        %v3027 = vunpack.c.l.b16 %v2868
        %v3028 = vunpack.c.l.b16 %v2869
        %v3029 = vunpack.c.h.b16 %v2867
        %v3030 = vunpack.c.h.b16 %v2868
        %v3031 = vunpack.c.h.b16 %v2869
        %v3032 = vunpack.c.l.b16 %v2870
        %v3033 = vunpack.c.l.b16 %v2871
        %v3034 = vunpack.c.l.b16 %v2872
        %v3035 = vunpack.c.h.b16 %v2870
        %v3036 = vunpack.c.h.b16 %v2871
        %v3037 = vunpack.c.h.b16 %v2872
        %v3038 = vunpack.c.l.b16 %v2873
        %v3039 = vunpack.c.l.b16 %v2874
        %v3040 = vunpack.c.l.b16 %v2875
        %v3041 = vunpack.c.h.b16 %v2873
        %v3042 = vunpack.c.h.b16 %v2874
        %v3043 = vunpack.c.h.b16 %v2875
        %v3044 = vunpack.c.l.b16 %v2876
        %v3045 = vunpack.c.l.b16 %v2877
        %v3046 = vunpack.c.l.b16 %v2878
        %v3047 = vunpack.c.h.b16 %v2876
        %v3048 = vunpack.c.h.b16 %v2877
        %v3049 = vunpack.c.h.b16 %v2878
        %v3050 = vunpack.c.l.b16 %v2879
        %v3051 = vunpack.c.l.b16 %v2880
        %v3052 = vunpack.c.l.b16 %v2881
        %v3053 = vunpack.c.h.b16 %v2879
        %v3054 = vunpack.c.h.b16 %v2880
        %v3055 = vunpack.c.h.b16 %v2881
        %v3056 = vunpack.c.l.b16 %v2882
        %v3057 = vunpack.c.l.b16 %v2883
        %v3058 = vunpack.c.l.b16 %v2884
        %v3059 = vunpack.c.h.b16 %v2882
        %v3060 = vunpack.c.h.b16 %v2883
        %v3061 = vunpack.c.h.b16 %v2884
        %v3062 = vunpack.c.l.b16 %v2885
        %v3063 = vunpack.c.l.b16 %v2886
        %v3064 = vunpack.c.l.b16 %v2887
        %v3065 = vunpack.c.h.b16 %v2885
        %v3066 = vunpack.c.h.b16 %v2886
        %v3067 = vunpack.c.h.b16 %v2887
        %v3068 = vpack.c.b16 %v2949, %v2948
        %v3069 = vpack.c.b16 %v2950, %v2950
        %v3070 = vpack.c.b16 %v2952, %v2951
        %v3071 = vpack.c.b16 %v2953, %v2953
        %v3072 = vpack.c.b16 %v2955, %v2954
        %v3073 = vpack.c.b16 %v2956, %v2956
        %v3074 = vpack.c.b16 %v2958, %v2957
        %v3075 = vpack.c.b16 %v2959, %v2959
        %v3076 = vpack.c.b16 %v2961, %v2960
        %v3077 = vpack.c.b16 %v2962, %v2962
        %v3078 = vpack.c.b16 %v2964, %v2963
        %v3079 = vpack.c.b16 %v2965, %v2965
        %v3080 = vpack.c.b16 %v2967, %v2966
        %v3081 = vpack.c.b16 %v2968, %v2968
        %v3082 = vpack.c.b16 %v2970, %v2969
        %v3083 = vpack.c.b16 %v2971, %v2971
        %v3084 = vpack.c.b16 %v2973, %v2972
        %v3085 = vpack.c.b16 %v2974, %v2974
        %v3086 = vpack.c.b16 %v2976, %v2975
        %v3087 = vpack.c.b16 %v2977, %v2977
        %v3088 = vpack.c.b16 %v2979, %v2978
        %v3089 = vpack.c.b16 %v2980, %v2980
        %v3090 = vpack.c.b16 %v2982, %v2981
        %v3091 = vpack.c.b16 %v2983, %v2983
        %v3092 = vpack.c.b16 %v2985, %v2984
        %v3093 = vpack.c.b16 %v2986, %v2986
        %v3094 = vpack.c.b16 %v2988, %v2987
        %v3095 = vpack.c.b16 %v2989, %v2989
        %v3096 = vpack.c.b16 %v2991, %v2990
        %v3097 = vpack.c.b16 %v2992, %v2992
        %v3098 = vpack.c.b16 %v2994, %v2993
        %v3099 = vpack.c.b16 %v2995, %v2995
        %v3100 = vpack.c.b16 %v2997, %v2996
        %v3101 = vpack.c.b16 %v2998, %v2998
        %v3102 = vpack.c.b16 %v3000, %v2999
        %v3103 = vpack.c.b16 %v3001, %v3001
        %v3104 = vpack.c.b16 %v3003, %v3002
        %v3105 = vpack.c.b16 %v3004, %v3004
        %v3106 = vpack.c.b16 %v3006, %v3005
        %v3107 = vpack.c.b16 %v3007, %v3007
        %v3108 = vpack.c.b16 %v3009, %v3008
        %v3109 = vpack.c.b16 %v3010, %v3010
        %v3110 = vpack.c.b16 %v3012, %v3011
        %v3111 = vpack.c.b16 %v3013, %v3013
        %v3112 = vpack.c.b16 %v3015, %v3014
        %v3113 = vpack.c.b16 %v3016, %v3016
        %v3114 = vpack.c.b16 %v3018, %v3017
        %v3115 = vpack.c.b16 %v3019, %v3019
        %v3116 = vpack.c.b16 %v3021, %v3020
        %v3117 = vpack.c.b16 %v3022, %v3022
        %v3118 = vpack.c.b16 %v3024, %v3023
        %v3119 = vpack.c.b16 %v3025, %v3025
        %v3120 = vpack.c.b16 %v3027, %v3026
        %v3121 = vpack.c.b16 %v3028, %v3028
        %v3122 = vpack.c.b16 %v3030, %v3029
        %v3123 = vpack.c.b16 %v3031, %v3031
        %v3124 = vpack.c.b16 %v3033, %v3032
        %v3125 = vpack.c.b16 %v3034, %v3034
        %v3126 = vpack.c.b16 %v3036, %v3035
        %v3127 = vpack.c.b16 %v3037, %v3037
        %v3128 = vpack.c.b16 %v3039, %v3038
        %v3129 = vpack.c.b16 %v3040, %v3040
        %v3130 = vpack.c.b16 %v3042, %v3041
        %v3131 = vpack.c.b16 %v3043, %v3043
        %v3132 = vpack.c.b16 %v3045, %v3044
        %v3133 = vpack.c.b16 %v3046, %v3046
        %v3134 = vpack.c.b16 %v3048, %v3047
        %v3135 = vpack.c.b16 %v3049, %v3049
        %v3136 = vpack.c.b16 %v3051, %v3050
        %v3137 = vpack.c.b16 %v3052, %v3052
        %v3138 = vpack.c.b16 %v3054, %v3053
        %v3139 = vpack.c.b16 %v3055, %v3055
        %v3140 = vpack.c.b16 %v3057, %v3056
        %v3141 = vpack.c.b16 %v3058, %v3058
        %v3142 = vpack.c.b16 %v3060, %v3059
        %v3143 = vpack.c.b16 %v3061, %v3061
        %v3144 = vpack.c.b16 %v3063, %v3062
        %v3145 = vpack.c.b16 %v3064, %v3064
        %v3146 = vpack.c.b16 %v3066, %v3065
        %v3147 = vpack.c.b16 %v3067, %v3067
        %s3228 = scalar_lea.vmem %s204, 960 [#allocation7]
        %3229 = vst [vmem:[%s3228] sm:$0xff] %v3068
        %3230 = vst.msk [vmem:[%s3228 + $0x8] sm:$0xf] %vm1415, %v3069
        %3231 = vst [vmem:[%s3228 + $0xc] sm:$0xff] %v3070
        %3232 = vst.msk [vmem:[%s3228 + $0x14] sm:$0xf] %vm1415, %v3071
        %3233 = vst [vmem:[%s3228 + $0x18] sm:$0xff] %v3072
        %3234 = vst.msk [vmem:[%s3228 + $0x20] sm:$0xf] %vm1415, %v3073
        %3235 = vst [vmem:[%s3228 + $0x24] sm:$0xff] %v3074
        %3236 = vst.msk [vmem:[%s3228 + $0x2c] sm:$0xf] %vm1415, %v3075
        %3237 = vst [vmem:[%s3228 + $0x30] sm:$0xff] %v3076
        %3238 = vst.msk [vmem:[%s3228 + $0x38] sm:$0xf] %vm1415, %v3077
        %3239 = vst [vmem:[%s3228 + $0x3c] sm:$0xff] %v3078
        %3240 = vst.msk [vmem:[%s3228 + $0x44] sm:$0xf] %vm1415, %v3079
        %3241 = vst [vmem:[%s3228 + $0x48] sm:$0xff] %v3080
        %3242 = vst.msk [vmem:[%s3228 + $0x50] sm:$0xf] %vm1415, %v3081
        %3243 = vst [vmem:[%s3228 + $0x54] sm:$0xff] %v3082
        %3244 = vst.msk [vmem:[%s3228 + $0x5c] sm:$0xf] %vm1415, %v3083
        %3245 = vst [vmem:[%s3228 + $0x60] sm:$0xff] %v3084
        %3246 = vst.msk [vmem:[%s3228 + $0x68] sm:$0xf] %vm1415, %v3085
        %3247 = vst [vmem:[%s3228 + $0x6c] sm:$0xff] %v3086
        %3248 = vst.msk [vmem:[%s3228 + $0x74] sm:$0xf] %vm1415, %v3087
        %3249 = vst [vmem:[%s3228 + $0x78] sm:$0xff] %v3088
        %3250 = vst.msk [vmem:[%s3228 + $0x80] sm:$0xf] %vm1415, %v3089
        %3251 = vst [vmem:[%s3228 + $0x84] sm:$0xff] %v3090
        %3252 = vst.msk [vmem:[%s3228 + $0x8c] sm:$0xf] %vm1415, %v3091
        %3253 = vst [vmem:[%s3228 + $0x90] sm:$0xff] %v3092
        %3254 = vst.msk [vmem:[%s3228 + $0x98] sm:$0xf] %vm1415, %v3093
        %3255 = vst [vmem:[%s3228 + $0x9c] sm:$0xff] %v3094
        %3256 = vst.msk [vmem:[%s3228 + $0xa4] sm:$0xf] %vm1415, %v3095
        %3257 = vst [vmem:[%s3228 + $0xa8] sm:$0xff] %v3096
        %3258 = vst.msk [vmem:[%s3228 + $0xb0] sm:$0xf] %vm1415, %v3097
        %3259 = vst [vmem:[%s3228 + $0xb4] sm:$0xff] %v3098
        %3260 = vst.msk [vmem:[%s3228 + $0xbc] sm:$0xf] %vm1415, %v3099
        %3261 = vst [vmem:[%s3228 + $0xc0] sm:$0xff] %v3100
        %3262 = vst.msk [vmem:[%s3228 + $0xc8] sm:$0xf] %vm1415, %v3101
        %3263 = vst [vmem:[%s3228 + $0xcc] sm:$0xff] %v3102
        %3264 = vst.msk [vmem:[%s3228 + $0xd4] sm:$0xf] %vm1415, %v3103
        %3265 = vst [vmem:[%s3228 + $0xd8] sm:$0xff] %v3104
        %3266 = vst.msk [vmem:[%s3228 + $0xe0] sm:$0xf] %vm1415, %v3105
        %3267 = vst [vmem:[%s3228 + $0xe4] sm:$0xff] %v3106
        %3268 = vst.msk [vmem:[%s3228 + $0xec] sm:$0xf] %vm1415, %v3107
        %3269 = vst [vmem:[%s3228 + $0xf0] sm:$0xff] %v3108
        %3270 = vst.msk [vmem:[%s3228 + $0xf8] sm:$0xf] %vm1415, %v3109
        %3271 = vst [vmem:[%s3228 + $0xfc] sm:$0xff] %v3110
        %3272 = vst.msk [vmem:[%s3228 + $0x104] sm:$0xf] %vm1415, %v3111
        %3273 = vst [vmem:[%s3228 + $0x108] sm:$0xff] %v3112
        %3274 = vst.msk [vmem:[%s3228 + $0x110] sm:$0xf] %vm1415, %v3113
        %3275 = vst [vmem:[%s3228 + $0x114] sm:$0xff] %v3114
        %3276 = vst.msk [vmem:[%s3228 + $0x11c] sm:$0xf] %vm1415, %v3115
        %3277 = vst [vmem:[%s3228 + $0x120] sm:$0xff] %v3116
        %3278 = vst.msk [vmem:[%s3228 + $0x128] sm:$0xf] %vm1415, %v3117
        %3279 = vst [vmem:[%s3228 + $0x12c] sm:$0xff] %v3118
        %3280 = vst.msk [vmem:[%s3228 + $0x134] sm:$0xf] %vm1415, %v3119
        %3281 = vst [vmem:[%s3228 + $0x138] sm:$0xff] %v3120
        %3282 = vst.msk [vmem:[%s3228 + $0x140] sm:$0xf] %vm1415, %v3121
        %3283 = vst [vmem:[%s3228 + $0x144] sm:$0xff] %v3122
        %3284 = vst.msk [vmem:[%s3228 + $0x14c] sm:$0xf] %vm1415, %v3123
        %3285 = vst [vmem:[%s3228 + $0x150] sm:$0xff] %v3124
        %3286 = vst.msk [vmem:[%s3228 + $0x158] sm:$0xf] %vm1415, %v3125
        %3287 = vst [vmem:[%s3228 + $0x15c] sm:$0xff] %v3126
        %3288 = vst.msk [vmem:[%s3228 + $0x164] sm:$0xf] %vm1415, %v3127
        %3289 = vst [vmem:[%s3228 + $0x168] sm:$0xff] %v3128
        %3290 = vst.msk [vmem:[%s3228 + $0x170] sm:$0xf] %vm1415, %v3129
        %3291 = vst [vmem:[%s3228 + $0x174] sm:$0xff] %v3130
        %3292 = vst.msk [vmem:[%s3228 + $0x17c] sm:$0xf] %vm1415, %v3131
        %3293 = vst [vmem:[%s3228 + $0x180] sm:$0xff] %v3132
        %3294 = vst.msk [vmem:[%s3228 + $0x188] sm:$0xf] %vm1415, %v3133
        %3295 = vst [vmem:[%s3228 + $0x18c] sm:$0xff] %v3134
        %3296 = vst.msk [vmem:[%s3228 + $0x194] sm:$0xf] %vm1415, %v3135
        %3297 = vst [vmem:[%s3228 + $0x198] sm:$0xff] %v3136
        %3298 = vst.msk [vmem:[%s3228 + $0x1a0] sm:$0xf] %vm1415, %v3137
        %3299 = vst [vmem:[%s3228 + $0x1a4] sm:$0xff] %v3138
        %3300 = vst.msk [vmem:[%s3228 + $0x1ac] sm:$0xf] %vm1415, %v3139
        %3301 = vst [vmem:[%s3228 + $0x1b0] sm:$0xff] %v3140
        %3302 = vst.msk [vmem:[%s3228 + $0x1b8] sm:$0xf] %vm1415, %v3141
        %3303 = vst [vmem:[%s3228 + $0x1bc] sm:$0xff] %v3142
        %3304 = vst.msk [vmem:[%s3228 + $0x1c4] sm:$0xf] %vm1415, %v3143
        %3305 = vst [vmem:[%s3228 + $0x1c8] sm:$0xff] %v3144
        %3306 = vst.msk [vmem:[%s3228 + $0x1d0] sm:$0xf] %vm1415, %v3145
        %3307 = vst [vmem:[%s3228 + $0x1d4] sm:$0xff] %v3146
        %3308 = vst.msk [vmem:[%s3228 + $0x1dc] sm:$0xf] %vm1415, %v3147
        %s3309 = sand.u32 %s97, 1
        %s3310 = scalar_lea.sflag [#allocation4], %s3309
        %s3311 = sand.u32 %s97, 1
        %s3312 = smul.addr %s3311, 1440
        %s3313 = scalar_lea.vmem [#allocation7], %s3312
        // Predicated region
        $region41: #{tpu_custom_call.1} parent=31 // pred_check
          %p3314 = pneg %p107
        $region42: #{tpu_custom_call.1} parent=31 // pred_check_branch
          %3316 = sbr.rel (%p3314) target = $region44
        $region43: #{tpu_custom_call.1} parent=31 // pred_region
          %s3317 = smul.u32 3, %s21
          %s3319 = ssub.s32 23040, 23040
          %3320 = vsyncadd %s3310, %s3319
          %s3321 = smul.addr %s3317, 120
          %s3322 = smul.addr %s3321, 64
          %s3323 = scalar_lea.hbm %s3, %s3322
          %s3324 = sshll.u32 %s3313, 4
          %s3325 = int_to_ptr.vmem [resolvable:$true] %s3324
          %3330 = dma.vmem_to_hbm [thread:$0]  %s3325, 23040, %s3323, %s3310, 192, 192, 12
        $region44: #{tpu_custom_call.1} parent=31 // pred_fallthru
          _
      $region32: #{tpu_custom_call.1} parent=5 // pred_fallthru
        _
      %p3331 = scmp.le.s32.totalorder 2, %s16
      // Predicated region
      $region45: #{tpu_custom_call.1} parent=5 // pred_check
        %p3332 = pneg %p3331
      $region46: #{tpu_custom_call.1} parent=5 // pred_check_branch
        %3334 = sbr.rel (%p3332) target = $region48
      $region47: #{tpu_custom_call.1} parent=5 // pred_region
        %s3335 = ssub.s32 %s16, 2
        // Predicated region
        $region49: #{tpu_custom_call.1} parent=47 // pred_check
          %p3336 = pneg %p113
        $region50: #{tpu_custom_call.1} parent=47 // pred_check_branch
          %3338 = sbr.rel (%p3336) target = $region52
        $region51: #{tpu_custom_call.1} parent=47 // pred_region
          %s3339 = sand.u32 %s98, 1
          %s3340 = scalar_lea.sflag [#allocation4], %s3339
          %s3341 = sand.u32 %s98, 1
          %s3342 = smul.addr %s3341, 1440
          %s3343 = scalar_lea.vmem [#allocation7], %s3342
          %3344 = dma.done %s3340, 23040
        $region52: #{tpu_custom_call.1} parent=47 // pred_fallthru
          _
      $region48: #{tpu_custom_call.1} parent=5 // pred_fallthru
        _
    $region6: #{tpu_custom_call.1} parent=1 // loop_footer
      %s20 = sadd.s32 1, %s16
    $region7: #{tpu_custom_call.1} parent=1 // loop_footer_branch
      %15 = sbr.rel target = $region3
    $region8: #{tpu_custom_call.1} parent=1 // loop_exit
      _
    %3345 = vsyncpa [#allocation3], 1
    %s3346 = scalar_lea.sflag [#allocation3], 1
    %3347 = vsyncpa %s3346, 1
    %3348 = vsyncpa [#allocation6], 1
    %s3349 = scalar_lea.sflag [#allocation6], 1
    %3350 = vsyncpa %s3349, 1
    %3351 = vsyncpa [#allocation4], 1
    %s3352 = scalar_lea.sflag [#allocation4], 1
    %3353 = vsyncpa %s3352, 1

</llo_original>
